<compile_context>
chip_gen: v5e
topology: v5e:2x2
jax: 0.10.0
libtpu: 0.0.40
codegen_flags: <defaults>
</compile_context>

<pallas_src>
import functools

import jax
import jax.numpy as jnp
from jax import lax
from jax.experimental import pallas as pl
from jax.experimental.pallas import tpu as pltpu

EPS = 1e-5
LANE = 128
VMEM_LIMIT = 32 * 1024 * 1024   # safe scoped-VMEM budget across v5e/v6e/v7x


def _round_up(x, m):
    return (x + m - 1) // m * m


# ----------------------------- Pallas kernels ------------------------------ #

def conv1_stats_kernel(p00, p01, p10, p11, w_ref, g_ref, b_ref,
                       y_ref, stats_ref, sum_sc, sumsq_sc, *, ho, wo, m_true):
    """conv1 (3x3, stride 2, pad 1) for one batch element as 9 shifted matmuls
    over the 2x2 phase decomposition of the padded input, plus BN1 statistics
    accumulated across the batch grid.  On the last step the folded affine
    (scale = gamma*rsqrt(var+eps), bias = beta - mean*scale) is emitted."""
    i = pl.program_id(0)

    @pl.when(i == 0)
    def _init():
        sum_sc[...] = jnp.zeros_like(sum_sc)
        sumsq_sc[...] = jnp.zeros_like(sumsq_sc)
        stats_ref[...] = jnp.zeros_like(stats_ref)

    m1 = ho * wo
    cp = w_ref.shape[2]
    phase_refs = (p00, p01, p10, p11)
    acc = jnp.zeros((m1, cp), jnp.float32)
    for di in range(3):
        for dj in range(3):
            p_ref = phase_refs[2 * (di % 2) + (dj % 2)]
            ro, co = di // 2, dj // 2
            xs = p_ref[0, ro:ro + ho, co:co + wo, :]            # (ho, wo, cin_p)
            acc = acc + jnp.dot(xs.reshape(m1, xs.shape[-1]),
                                w_ref[di * 3 + dj],
                                preferred_element_type=jnp.float32)
    y_ref[0] = acc

    sum_sc[...] += jnp.sum(acc, axis=0, keepdims=True)
    sumsq_sc[...] += jnp.sum(acc * acc, axis=0, keepdims=True)

    @pl.when(i == pl.num_programs(0) - 1)
    def _finalize():
        inv_m = 1.0 / float(m_true)
        mean = sum_sc[...] * inv_m
        var = sumsq_sc[...] * inv_m - mean * mean     # biased (torch train mode)
        scale = g_ref[...] * lax.rsqrt(var + EPS)
        bias = b_ref[...] - mean * scale
        stats_ref[0:1, :] = scale
        stats_ref[1:2, :] = bias


def conv2_stats_kernel(y1_ref, s1_ref, w_ref, g_ref, b_ref,
                       y_ref, stats_ref, pad_sc, sum_sc, sumsq_sc,
                       *, ho, wo, m_true):
    """Fused BN1-apply + ReLU + conv2 (3x3, stride 1, pad 1) for one batch
    element, plus BN2 statistics across the batch grid.  The zero border for
    conv2's padding is constructed in VMEM scratch AFTER the activation so the
    padded positions contribute exactly 0."""
    i = pl.program_id(0)

    @pl.when(i == 0)
    def _init():
        sum_sc[...] = jnp.zeros_like(sum_sc)
        sumsq_sc[...] = jnp.zeros_like(sumsq_sc)
        stats_ref[...] = jnp.zeros_like(stats_ref)

    m1 = ho * wo
    cp = w_ref.shape[2]
    scale1 = s1_ref[0:1, :]
    bias1 = s1_ref[1:2, :]
    act = jnp.maximum(y1_ref[0] * scale1 + bias1, 0.0)          # BN1 + ReLU

    pad_sc[...] = jnp.zeros_like(pad_sc)                        # zero halo border
    pad_sc[1:1 + ho, 1:1 + wo, :] = act.reshape(ho, wo, cp)

    acc = jnp.zeros((m1, cp), jnp.float32)
    for di in range(3):
        for dj in range(3):
            xs = pad_sc[di:di + ho, dj:dj + wo, :]              # (ho, wo, cp)
            acc = acc + jnp.dot(xs.reshape(m1, cp), w_ref[di * 3 + dj],
                                preferred_element_type=jnp.float32)
    y_ref[0] = acc

    sum_sc[...] += jnp.sum(acc, axis=0, keepdims=True)
    sumsq_sc[...] += jnp.sum(acc * acc, axis=0, keepdims=True)

    @pl.when(i == pl.num_programs(0) - 1)
    def _finalize():
        inv_m = 1.0 / float(m_true)
        mean = sum_sc[...] * inv_m
        var = sumsq_sc[...] * inv_m - mean * mean
        scale = g_ref[...] * lax.rsqrt(var + EPS)
        bias = b_ref[...] - mean * scale
        stats_ref[0:1, :] = scale
        stats_ref[1:2, :] = bias


def bn_res_relu_kernel(y_ref, rp_ref, wp_ref, stats_ref, o_ref):
    """Final streaming pass: relu(y2 * scale2 + bias2 + rp @ wp); the residual
    1x1/s2 conv is a small fused matmul on the already-resident tile."""
    scale = stats_ref[0:1, :]
    bias = stats_ref[1:2, :]
    res = jnp.dot(rp_ref[...], wp_ref[...], preferred_element_type=jnp.float32)
    o_ref[...] = jnp.maximum(y_ref[...] * scale + bias + res, 0.0)


# --------------------------- pallas_call wrappers --------------------------- #

def conv1_stats(phases, w1t, g1p, b1p, *, n, ho, wo, cin_p, cp):
    m1 = ho * wo
    kern = functools.partial(conv1_stats_kernel, ho=ho, wo=wo, m_true=n * m1)
    return pl.pallas_call(
        kern,
        out_shape=(jax.ShapeDtypeStruct((n, m1, cp), jnp.float32),
                   jax.ShapeDtypeStruct((8, cp), jnp.float32)),
        grid_spec=pltpu.PrefetchScalarGridSpec(
            num_scalar_prefetch=0,
            grid=(n,),
            in_specs=[pl.BlockSpec((1, ho + 1, wo + 1, cin_p),
                                   lambda i: (i, 0, 0, 0))] * 4
                     + [pl.BlockSpec((9, cin_p, cp), lambda i: (0, 0, 0)),
                        pl.BlockSpec((1, cp), lambda i: (0, 0)),
                        pl.BlockSpec((1, cp), lambda i: (0, 0))],
            out_specs=[pl.BlockSpec((1, m1, cp), lambda i: (i, 0, 0)),
                       pl.BlockSpec((8, cp), lambda i: (0, 0))],
            scratch_shapes=[pltpu.VMEM((1, cp), jnp.float32),
                            pltpu.VMEM((1, cp), jnp.float32)]),
        compiler_params=pltpu.CompilerParams(
            dimension_semantics=("arbitrary",),   # BN stats reduce across batch
            vmem_limit_bytes=VMEM_LIMIT),
    )(*phases, w1t, g1p, b1p)


def conv2_stats(y1_raw, stats1, w2t, g2p, b2p, *, n, ho, wo, cp):
    m1 = ho * wo
    kern = functools.partial(conv2_stats_kernel, ho=ho, wo=wo, m_true=n * m1)
    return pl.pallas_call(
        kern,
        out_shape=(jax.ShapeDtypeStruct((n, m1, cp), jnp.float32),
                   jax.ShapeDtypeStruct((8, cp), jnp.float32)),
        grid_spec=pltpu.PrefetchScalarGridSpec(
            num_scalar_prefetch=0,
            grid=(n,),
            in_specs=[pl.BlockSpec((1, m1, cp), lambda i: (i, 0, 0)),
                      pl.BlockSpec((8, cp), lambda i: (0, 0)),
                      pl.BlockSpec((9, cp, cp), lambda i: (0, 0, 0)),
                      pl.BlockSpec((1, cp), lambda i: (0, 0)),
                      pl.BlockSpec((1, cp), lambda i: (0, 0))],
            out_specs=[pl.BlockSpec((1, m1, cp), lambda i: (i, 0, 0)),
                       pl.BlockSpec((8, cp), lambda i: (0, 0))],
            scratch_shapes=[pltpu.VMEM((ho + 2, wo + 2, cp), jnp.float32),
                            pltpu.VMEM((1, cp), jnp.float32),
                            pltpu.VMEM((1, cp), jnp.float32)]),
        compiler_params=pltpu.CompilerParams(
            dimension_semantics=("arbitrary",),
            vmem_limit_bytes=VMEM_LIMIT),
    )(y1_raw, stats1, w2t, g2p, b2p)


def bn_res_relu(y, rp, wpm, stats, tile_m):
    mp, c = y.shape
    kr = rp.shape[1]
    return pl.pallas_call(
        bn_res_relu_kernel,
        out_shape=jax.ShapeDtypeStruct((mp, c), jnp.float32),
        grid_spec=pltpu.PrefetchScalarGridSpec(
            num_scalar_prefetch=0,
            grid=(mp // tile_m,),
            in_specs=[pl.BlockSpec((tile_m, c), lambda i: (i, 0)),
                      pl.BlockSpec((tile_m, kr), lambda i: (i, 0)),
                      pl.BlockSpec((kr, c), lambda i: (0, 0)),
                      pl.BlockSpec((8, c), lambda i: (0, 0))],
            out_specs=pl.BlockSpec((tile_m, c), lambda i: (i, 0))),
        compiler_params=pltpu.CompilerParams(
            dimension_semantics=("parallel",),
            vmem_limit_bytes=VMEM_LIMIT),
    )(y, rp, wpm, stats)


# ------------------------------- JAX glue ---------------------------------- #

def res_block_down(x_nchw, params, tile_m=512):
    w1, w2, wp, g1, b1, g2, b2 = params
    n, cin, h, w = x_nchw.shape
    cout = w1.shape[0]
    assert h % 2 == 0 and w % 2 == 0, "even spatial dims expected (stride 2)"
    ho, wo = h // 2, w // 2
    m1 = ho * wo
    m = n * m1
    cp = _round_up(cout, LANE)        # lane-dense output channels (pad: gamma=beta=0)
    cin_p = _round_up(cin, 8)         # K padded only to a sublane multiple, NOT 128

    x = jnp.transpose(x_nchw, (0, 2, 3, 1))                     # NCHW -> NHWC
    x = jnp.pad(x, ((0, 0), (0, 0), (0, 0), (0, cin_p - cin)))
    xp = jnp.pad(x, ((0, 0), (1, 1), (1, 1), (0, 0)))           # conv1 spatial pad
    # 2x2 phase decomposition: conv1's stride-2 taps become contiguous shifted
    # windows of these four arrays (~1x input footprint, no 9x im2col blow-up).
    phases = [xp[:, a::2, b::2, :] for a in (0, 1) for b in (0, 1)]

    # per-tap weights (9, K, Cout) matching the shifted-matmul accumulation
    w1t = jnp.transpose(w1, (2, 3, 1, 0)).reshape(9, cin, cout)
    w1t = jnp.pad(w1t, ((0, 0), (0, cin_p - cin), (0, cp - cout)))
    g1p = jnp.pad(g1[None, :], ((0, 0), (0, cp - cout)))
    b1p = jnp.pad(b1[None, :], ((0, 0), (0, cp - cout)))

    y1_raw, stats1 = conv1_stats(phases, w1t, g1p, b1p,
                                 n=n, ho=ho, wo=wo, cin_p=cin_p, cp=cp)

    w2t = jnp.transpose(w2, (2, 3, 1, 0)).reshape(9, cout, cout)
    w2t = jnp.pad(w2t, ((0, 0), (0, cp - cout), (0, cp - cout)))
    g2p = jnp.pad(g2[None, :], ((0, 0), (0, cp - cout)))
    b2p = jnp.pad(b2[None, :], ((0, 0), (0, cp - cout)))

    # BN1-apply + ReLU are fused inside this kernel (no standalone BN pass).
    y2_raw, stats2 = conv2_stats(y1_raw, stats1, w2t, g2p, b2p,
                                 n=n, ho=ho, wo=wo, cp=cp)

    # residual 1x1/s2 conv: cheap cin-wide strided slice; matmul fused into the
    # final BN2 + ReLU streaming pass.
    rp = x[:, ::2, ::2, :].reshape(m, cin_p)
    wpm = jnp.pad(jnp.transpose(wp[:, :, 0, 0], (1, 0)),
                  ((0, cin_p - cin), (0, cp - cout)))

    y2_flat = y2_raw.reshape(m, cp)            # contiguous -> free reshape
    tm = _round_up(min(tile_m, _round_up(m, 8)), 8)
    mp = _round_up(m, tm)
    if mp != m:
        y2_flat = jnp.pad(y2_flat, ((0, mp - m), (0, 0)))
        rp = jnp.pad(rp, ((0, mp - m), (0, 0)))

    out = bn_res_relu(y2_flat, rp, wpm, stats2, tm)             # (mp, cp)
    out = out[:m, :cout].reshape(n, ho, wo, cout)
    # kept for semantic fidelity with the NCHW PyTorch module output layout
    return jnp.transpose(out, (0, 3, 1, 2))


# --------------------------- pure-JAX reference ----------------------------- #

def reference(x, params):
    w1, w2, wp, g1, b1, g2, b2 = params
    dn = ('NCHW', 'OIHW', 'NCHW')

    def bn(y, g, b):
        mean = jnp.mean(y, axis=(0, 2, 3), keepdims=True)
        var = jnp.mean((y - mean) ** 2, axis=(0, 2, 3), keepdims=True)
        return (y - mean) * lax.rsqrt(var + EPS) * g[None, :, None, None] + b[None, :, None, None]

    res = lax.conv_general_dilated(x, wp, (2, 2), 'VALID', dimension_numbers=dn)
    y = lax.conv_general_dilated(x, w1, (2, 2), ((1, 1), (1, 1)), dimension_numbers=dn)
    y = jnp.maximum(bn(y, g1, b1), 0.0)
    y = lax.conv_general_dilated(y, w2, (1, 1), ((1, 1), (1, 1)), dimension_numbers=dn)
    y = bn(y, g2, b2) + res
    return jnp.maximum(y, 0.0)


# ---------------------------------- main ------------------------------------ #

if __name__ == "__main__":
    key = jax.random.PRNGKey(0)
    k_x, k_w1, k_w2, k_wp = jax.random.split(key, 4)

    N, Cin, Cout, S = 2, 4, 8, 16
    x = jax.random.normal(k_x, (N, Cin, S, S), dtype=jnp.float32)

    # deterministic parameter init (shapes from the module __init__)
    w1 = jax.random.normal(k_w1, (Cout, Cin, 3, 3), dtype=jnp.float32) * 0.1
    w2 = jax.random.normal(k_w2, (Cout, Cout, 3, 3), dtype=jnp.float32) * 0.1
    wp = jax.random.normal(k_wp, (Cout, Cin, 1, 1), dtype=jnp.float32) * 0.1
    g1 = jnp.ones((Cout,), jnp.float32)
    b1 = jnp.zeros((Cout,), jnp.float32)
    g2 = jnp.ones((Cout,), jnp.float32)
    b2 = jnp.zeros((Cout,), jnp.float32)
    params = (w1, w2, wp, g1, b1, g2, b2)

    ref = jax.block_until_ready(reference(x, params))

    # tile_m=512 -> single final-pass tile at this size; tile_m=48 forces
    # multiple M tiles plus padded rows in the final streaming pass.
    for tm in (512, 48):
        out = jax.block_until_ready(res_block_down(x, params, tile_m=tm))
        assert out.shape == (N, Cout, S // 2, S // 2), out.shape
        err = float(jnp.max(jnp.abs(out - ref)))
        assert jnp.allclose(out, ref, atol=1e-4, rtol=1e-4), err

    print("KERNEL_OK")
</pallas_src>

<mosaic_0001>
module attributes {stable_mosaic.version = 11 : i64} {
  func.func @conv1_stats_kernel(%arg0: i32, %arg1: memref<1x9x9x8xf32, #tpu.memory_space<vmem>>, %arg2: memref<1x9x9x8xf32, #tpu.memory_space<vmem>>, %arg3: memref<1x9x9x8xf32, #tpu.memory_space<vmem>>, %arg4: memref<1x9x9x8xf32, #tpu.memory_space<vmem>>, %arg5: memref<9x8x128xf32, #tpu.memory_space<vmem>>, %arg6: memref<1x128xf32, #tpu.memory_space<vmem>>, %arg7: memref<1x128xf32, #tpu.memory_space<vmem>>, %arg8: memref<1x64x128xf32, #tpu.memory_space<vmem>>, %arg9: memref<8x128xf32, #tpu.memory_space<vmem>>, %arg10: memref<1x128xf32, #tpu.memory_space<vmem>>, %arg11: memref<1x128xf32, #tpu.memory_space<vmem>>) attributes {dimension_semantics = [#tpu.dimension_semantics<arbitrary>], iteration_bounds = array<i64: 2>, scalar_prefetch = 0 : i64, scratch_operands = 2 : i64, tpu.core_type = #tpu.core_type<tc>, window_params = [{transform_indices = @transform_0, window_bounds = array<i64: 1, 9, 9, 8>}, {transform_indices = @transform_1, window_bounds = array<i64: 1, 9, 9, 8>}, {transform_indices = @transform_2, window_bounds = array<i64: 1, 9, 9, 8>}, {transform_indices = @transform_3, window_bounds = array<i64: 1, 9, 9, 8>}, {pipeline_mode = #tpu.pipeline_mode<synchronous>, transform_indices = @transform_4, window_bounds = array<i64: 9, 8, 128>}, {pipeline_mode = #tpu.pipeline_mode<synchronous>, transform_indices = @transform_5, window_bounds = array<i64: 1, 128>}, {pipeline_mode = #tpu.pipeline_mode<synchronous>, transform_indices = @transform_6, window_bounds = array<i64: 1, 128>}, {transform_indices = @transform_7, window_bounds = array<i64: 1, 64, 128>}, {pipeline_mode = #tpu.pipeline_mode<synchronous>, transform_indices = @transform_8, window_bounds = array<i64: 8, 128>}]} {
    %c0_i32 = arith.constant 0 : i32
    %0 = arith.cmpi eq, %arg0, %c0_i32 : i32
    %1 = arith.extui %0 : i1 to i32
    %c0_i32_0 = arith.constant 0 : i32
    %2 = arith.cmpi ne, %1, %c0_i32_0 : i32
    scf.if %2 {
      %cst_78 = arith.constant 0.000000e+00 : f32
      %84 = vector.broadcast %cst_78 : f32 to vector<1x128xf32>
      %c0_79 = arith.constant 0 : index
      %c0_80 = arith.constant 0 : index
      %85 = vector.load %arg10[%c0_79, %c0_80] : memref<1x128xf32, #tpu.memory_space<vmem>>, vector<1x128xf32>
      tpu.vector_store %arg10[%c0_79, %c0_80], %84 {strides = array<i32>} : memref<1x128xf32, #tpu.memory_space<vmem>>, vector<1x128xf32>,
      %cst_81 = arith.constant 0.000000e+00 : f32
      %86 = vector.broadcast %cst_81 : f32 to vector<1x128xf32>
      %c0_82 = arith.constant 0 : index
      %c0_83 = arith.constant 0 : index
      %87 = vector.load %arg11[%c0_82, %c0_83] : memref<1x128xf32, #tpu.memory_space<vmem>>, vector<1x128xf32>
      tpu.vector_store %arg11[%c0_82, %c0_83], %86 {strides = array<i32>} : memref<1x128xf32, #tpu.memory_space<vmem>>, vector<1x128xf32>,
      %cst_84 = arith.constant 0.000000e+00 : f32
      %88 = vector.broadcast %cst_84 : f32 to vector<8x128xf32>
      %c0_85 = arith.constant 0 : index
      %c0_86 = arith.constant 0 : index
      %89 = vector.load %arg9[%c0_85, %c0_86] : memref<8x128xf32, #tpu.memory_space<vmem>>, vector<8x128xf32>
      tpu.vector_store %arg9[%c0_85, %c0_86], %88 {strides = array<i32>} : memref<8x128xf32, #tpu.memory_space<vmem>>, vector<8x128xf32>,
    } else {
    }
    %cst = arith.constant 0.000000e+00 : f32
    %3 = vector.broadcast %cst : f32 to vector<64x128xf32>
    %c0 = arith.constant 0 : index
    %c0_1 = arith.constant 0 : index
    %c0_2 = arith.constant 0 : index
    %c0_3 = arith.constant 0 : index
    %4 = vector.load %arg1[%c0, %c0_1, %c0_2, %c0_3] : memref<1x9x9x8xf32, #tpu.memory_space<vmem>>, vector<1x8x8x8xf32>
    %5 = vector.shape_cast %4 : vector<1x8x8x8xf32> to vector<8x8x8xf32>
    %6 = vector.shape_cast %5 : vector<8x8x8xf32> to vector<64x8xf32>
    %c0_4 = arith.constant 0 : index
    %c0_5 = arith.constant 0 : index
    %c0_6 = arith.constant 0 : index
    %7 = vector.load %arg5[%c0_4, %c0_5, %c0_6] : memref<9x8x128xf32, #tpu.memory_space<vmem>>, vector<1x8x128xf32>
    %8 = vector.shape_cast %7 : vector<1x8x128xf32> to vector<8x128xf32>
    %cst_7 = arith.constant dense<0.000000e+00> : vector<64x128xf32>
    %9 = tpu.matmul %6, %8, %cst_7 {dimension_numbers = #tpu.dot_dimension_numbers<[1], [0], [0], [1], [0, 0, 1, 1], [], []>} : vector<64x8xf32>, vector<8x128xf32>, vector<64x128xf32> -> vector<64x128xf32>
    %10 = arith.addf %3, %9 : vector<64x128xf32>
    %c0_8 = arith.constant 0 : index
    %c0_9 = arith.constant 0 : index
    %c0_10 = arith.constant 0 : index
    %c0_11 = arith.constant 0 : index
    %11 = vector.load %arg2[%c0_8, %c0_9, %c0_10, %c0_11] : memref<1x9x9x8xf32, #tpu.memory_space<vmem>>, vector<1x8x8x8xf32>
    %12 = vector.shape_cast %11 : vector<1x8x8x8xf32> to vector<8x8x8xf32>
    %13 = vector.shape_cast %12 : vector<8x8x8xf32> to vector<64x8xf32>
    %c1 = arith.constant 1 : index
    %c0_12 = arith.constant 0 : index
    %c0_13 = arith.constant 0 : index
    %14 = vector.load %arg5[%c1, %c0_12, %c0_13] : memref<9x8x128xf32, #tpu.memory_space<vmem>>, vector<1x8x128xf32>
    %15 = vector.shape_cast %14 : vector<1x8x128xf32> to vector<8x128xf32>
    %cst_14 = arith.constant dense<0.000000e+00> : vector<64x128xf32>
    %16 = tpu.matmul %13, %15, %cst_14 {dimension_numbers = #tpu.dot_dimension_numbers<[1], [0], [0], [1], [0, 0, 1, 1], [], []>} : vector<64x8xf32>, vector<8x128xf32>, vector<64x128xf32> -> vector<64x128xf32>
    %17 = arith.addf %10, %16 : vector<64x128xf32>
    %c0_15 = arith.constant 0 : index
    %c0_16 = arith.constant 0 : index
    %c1_17 = arith.constant 1 : index
    %c0_18 = arith.constant 0 : index
    %18 = vector.load %arg1[%c0_15, %c0_16, %c1_17, %c0_18] : memref<1x9x9x8xf32, #tpu.memory_space<vmem>>, vector<1x8x8x8xf32>
    %19 = vector.shape_cast %18 : vector<1x8x8x8xf32> to vector<8x8x8xf32>
    %20 = vector.shape_cast %19 : vector<8x8x8xf32> to vector<64x8xf32>
    %c2 = arith.constant 2 : index
    %c0_19 = arith.constant 0 : index
    %c0_20 = arith.constant 0 : index
    %21 = vector.load %arg5[%c2, %c0_19, %c0_20] : memref<9x8x128xf32, #tpu.memory_space<vmem>>, vector<1x8x128xf32>
    %22 = vector.shape_cast %21 : vector<1x8x128xf32> to vector<8x128xf32>
    %cst_21 = arith.constant dense<0.000000e+00> : vector<64x128xf32>
    %23 = tpu.matmul %20, %22, %cst_21 {dimension_numbers = #tpu.dot_dimension_numbers<[1], [0], [0], [1], [0, 0, 1, 1], [], []>} : vector<64x8xf32>, vector<8x128xf32>, vector<64x128xf32> -> vector<64x128xf32>
    %24 = arith.addf %17, %23 : vector<64x128xf32>
    %c0_22 = arith.constant 0 : index
    %c0_23 = arith.constant 0 : index
    %c0_24 = arith.constant 0 : index
    %c0_25 = arith.constant 0 : index
    %25 = vector.load %arg3[%c0_22, %c0_23, %c0_24, %c0_25] : memref<1x9x9x8xf32, #tpu.memory_space<vmem>>, vector<1x8x8x8xf32>
    %26 = vector.shape_cast %25 : vector<1x8x8x8xf32> to vector<8x8x8xf32>
    %27 = vector.shape_cast %26 : vector<8x8x8xf32> to vector<64x8xf32>
    %c3 = arith.constant 3 : index
    %c0_26 = arith.constant 0 : index
    %c0_27 = arith.constant 0 : index
    %28 = vector.load %arg5[%c3, %c0_26, %c0_27] : memref<9x8x128xf32, #tpu.memory_space<vmem>>, vector<1x8x128xf32>
    %29 = vector.shape_cast %28 : vector<1x8x128xf32> to vector<8x128xf32>
    %cst_28 = arith.constant dense<0.000000e+00> : vector<64x128xf32>
    %30 = tpu.matmul %27, %29, %cst_28 {dimension_numbers = #tpu.dot_dimension_numbers<[1], [0], [0], [1], [0, 0, 1, 1], [], []>} : vector<64x8xf32>, vector<8x128xf32>, vector<64x128xf32> -> vector<64x128xf32>
    %31 = arith.addf %24, %30 : vector<64x128xf32>
    %c0_29 = arith.constant 0 : index
    %c0_30 = arith.constant 0 : index
    %c0_31 = arith.constant 0 : index
    %c0_32 = arith.constant 0 : index
    %32 = vector.load %arg4[%c0_29, %c0_30, %c0_31, %c0_32] : memref<1x9x9x8xf32, #tpu.memory_space<vmem>>, vector<1x8x8x8xf32>
    %33 = vector.shape_cast %32 : vector<1x8x8x8xf32> to vector<8x8x8xf32>
    %34 = vector.shape_cast %33 : vector<8x8x8xf32> to vector<64x8xf32>
    %c4 = arith.constant 4 : index
    %c0_33 = arith.constant 0 : index
    %c0_34 = arith.constant 0 : index
    %35 = vector.load %arg5[%c4, %c0_33, %c0_34] : memref<9x8x128xf32, #tpu.memory_space<vmem>>, vector<1x8x128xf32>
    %36 = vector.shape_cast %35 : vector<1x8x128xf32> to vector<8x128xf32>
    %cst_35 = arith.constant dense<0.000000e+00> : vector<64x128xf32>
    %37 = tpu.matmul %34, %36, %cst_35 {dimension_numbers = #tpu.dot_dimension_numbers<[1], [0], [0], [1], [0, 0, 1, 1], [], []>} : vector<64x8xf32>, vector<8x128xf32>, vector<64x128xf32> -> vector<64x128xf32>
    %38 = arith.addf %31, %37 : vector<64x128xf32>
    %c0_36 = arith.constant 0 : index
    %c0_37 = arith.constant 0 : index
    %c1_38 = arith.constant 1 : index
    %c0_39 = arith.constant 0 : index
    %39 = vector.load %arg3[%c0_36, %c0_37, %c1_38, %c0_39] : memref<1x9x9x8xf32, #tpu.memory_space<vmem>>, vector<1x8x8x8xf32>
    %40 = vector.shape_cast %39 : vector<1x8x8x8xf32> to vector<8x8x8xf32>
    %41 = vector.shape_cast %40 : vector<8x8x8xf32> to vector<64x8xf32>
    %c5 = arith.constant 5 : index
    %c0_40 = arith.constant 0 : index
    %c0_41 = arith.constant 0 : index
    %42 = vector.load %arg5[%c5, %c0_40, %c0_41] : memref<9x8x128xf32, #tpu.memory_space<vmem>>, vector<1x8x128xf32>
    %43 = vector.shape_cast %42 : vector<1x8x128xf32> to vector<8x128xf32>
    %cst_42 = arith.constant dense<0.000000e+00> : vector<64x128xf32>
    %44 = tpu.matmul %41, %43, %cst_42 {dimension_numbers = #tpu.dot_dimension_numbers<[1], [0], [0], [1], [0, 0, 1, 1], [], []>} : vector<64x8xf32>, vector<8x128xf32>, vector<64x128xf32> -> vector<64x128xf32>
    %45 = arith.addf %38, %44 : vector<64x128xf32>
    %c0_43 = arith.constant 0 : index
    %c1_44 = arith.constant 1 : index
    %c0_45 = arith.constant 0 : index
    %c0_46 = arith.constant 0 : index
    %46 = vector.load %arg1[%c0_43, %c1_44, %c0_45, %c0_46] : memref<1x9x9x8xf32, #tpu.memory_space<vmem>>, vector<1x8x8x8xf32>
    %47 = vector.shape_cast %46 : vector<1x8x8x8xf32> to vector<8x8x8xf32>
    %48 = vector.shape_cast %47 : vector<8x8x8xf32> to vector<64x8xf32>
    %c6 = arith.constant 6 : index
    %c0_47 = arith.constant 0 : index
    %c0_48 = arith.constant 0 : index
    %49 = vector.load %arg5[%c6, %c0_47, %c0_48] : memref<9x8x128xf32, #tpu.memory_space<vmem>>, vector<1x8x128xf32>
    %50 = vector.shape_cast %49 : vector<1x8x128xf32> to vector<8x128xf32>
    %cst_49 = arith.constant dense<0.000000e+00> : vector<64x128xf32>
    %51 = tpu.matmul %48, %50, %cst_49 {dimension_numbers = #tpu.dot_dimension_numbers<[1], [0], [0], [1], [0, 0, 1, 1], [], []>} : vector<64x8xf32>, vector<8x128xf32>, vector<64x128xf32> -> vector<64x128xf32>
    %52 = arith.addf %45, %51 : vector<64x128xf32>
    %c0_50 = arith.constant 0 : index
    %c1_51 = arith.constant 1 : index
    %c0_52 = arith.constant 0 : index
    %c0_53 = arith.constant 0 : index
    %53 = vector.load %arg2[%c0_50, %c1_51, %c0_52, %c0_53] : memref<1x9x9x8xf32, #tpu.memory_space<vmem>>, vector<1x8x8x8xf32>
    %54 = vector.shape_cast %53 : vector<1x8x8x8xf32> to vector<8x8x8xf32>
    %55 = vector.shape_cast %54 : vector<8x8x8xf32> to vector<64x8xf32>
    %c7 = arith.constant 7 : index
    %c0_54 = arith.constant 0 : index
    %c0_55 = arith.constant 0 : index
    %56 = vector.load %arg5[%c7, %c0_54, %c0_55] : memref<9x8x128xf32, #tpu.memory_space<vmem>>, vector<1x8x128xf32>
    %57 = vector.shape_cast %56 : vector<1x8x128xf32> to vector<8x128xf32>
    %cst_56 = arith.constant dense<0.000000e+00> : vector<64x128xf32>
    %58 = tpu.matmul %55, %57, %cst_56 {dimension_numbers = #tpu.dot_dimension_numbers<[1], [0], [0], [1], [0, 0, 1, 1], [], []>} : vector<64x8xf32>, vector<8x128xf32>, vector<64x128xf32> -> vector<64x128xf32>
    %59 = arith.addf %52, %58 : vector<64x128xf32>
    %c0_57 = arith.constant 0 : index
    %c1_58 = arith.constant 1 : index
    %c1_59 = arith.constant 1 : index
    %c0_60 = arith.constant 0 : index
    %60 = vector.load %arg1[%c0_57, %c1_58, %c1_59, %c0_60] : memref<1x9x9x8xf32, #tpu.memory_space<vmem>>, vector<1x8x8x8xf32>
    %61 = vector.shape_cast %60 : vector<1x8x8x8xf32> to vector<8x8x8xf32>
    %62 = vector.shape_cast %61 : vector<8x8x8xf32> to vector<64x8xf32>
    %c8 = arith.constant 8 : index
    %c0_61 = arith.constant 0 : index
    %c0_62 = arith.constant 0 : index
    %63 = vector.load %arg5[%c8, %c0_61, %c0_62] : memref<9x8x128xf32, #tpu.memory_space<vmem>>, vector<1x8x128xf32>
    %64 = vector.shape_cast %63 : vector<1x8x128xf32> to vector<8x128xf32>
    %cst_63 = arith.constant dense<0.000000e+00> : vector<64x128xf32>
    %65 = tpu.matmul %62, %64, %cst_63 {dimension_numbers = #tpu.dot_dimension_numbers<[1], [0], [0], [1], [0, 0, 1, 1], [], []>} : vector<64x8xf32>, vector<8x128xf32>, vector<64x128xf32> -> vector<64x128xf32>
    %66 = arith.addf %59, %65 : vector<64x128xf32>
    %c0_64 = arith.constant 0 : index
    %c0_65 = arith.constant 0 : index
    %c0_66 = arith.constant 0 : index
    %67 = vector.load %arg8[%c0_64, %c0_65, %c0_66] : memref<1x64x128xf32, #tpu.memory_space<vmem>>, vector<1x64x128xf32>
    %68 = vector.shape_cast %67 : vector<1x64x128xf32> to vector<64x128xf32>
    %69 = vector.shape_cast %66 : vector<64x128xf32> to vector<1x64x128xf32>
    tpu.vector_store %arg8[%c0_64, %c0_65, %c0_66], %69 {strides = array<i32>} : memref<1x64x128xf32, #tpu.memory_space<vmem>>, vector<1x64x128xf32>,
    %c0_67 = arith.constant 0 : index
    %c0_68 = arith.constant 0 : index
    %70 = vector.load %arg10[%c0_67, %c0_68] : memref<1x128xf32, #tpu.memory_space<vmem>>, vector<1x128xf32>
    %cst_69 = arith.constant dense<0.000000e+00> : vector<128xf32>
    %71 = vector.multi_reduction <add>, %66, %cst_69 [0] : vector<64x128xf32> to vector<128xf32>
    %72 = vector.shape_cast %71 : vector<128xf32> to vector<1x128xf32>
    %73 = arith.addf %70, %72 : vector<1x128xf32>
    %c0_70 = arith.constant 0 : index
    %c0_71 = arith.constant 0 : index
    %74 = vector.load %arg10[%c0_70, %c0_71] : memref<1x128xf32, #tpu.memory_space<vmem>>, vector<1x128xf32>
    tpu.vector_store %arg10[%c0_70, %c0_71], %73 {strides = array<i32>} : memref<1x128xf32, #tpu.memory_space<vmem>>, vector<1x128xf32>,
    %c0_72 = arith.constant 0 : index
    %c0_73 = arith.constant 0 : index
    %75 = vector.load %arg11[%c0_72, %c0_73] : memref<1x128xf32, #tpu.memory_space<vmem>>, vector<1x128xf32>
    %76 = arith.mulf %66, %66 : vector<64x128xf32>
    %cst_74 = arith.constant dense<0.000000e+00> : vector<128xf32>
    %77 = vector.multi_reduction <add>, %76, %cst_74 [0] : vector<64x128xf32> to vector<128xf32>
    %78 = vector.shape_cast %77 : vector<128xf32> to vector<1x128xf32>
    %79 = arith.addf %75, %78 : vector<1x128xf32>
    %c0_75 = arith.constant 0 : index
    %c0_76 = arith.constant 0 : index
    %80 = vector.load %arg11[%c0_75, %c0_76] : memref<1x128xf32, #tpu.memory_space<vmem>>, vector<1x128xf32>
    tpu.vector_store %arg11[%c0_75, %c0_76], %79 {strides = array<i32>} : memref<1x128xf32, #tpu.memory_space<vmem>>, vector<1x128xf32>,
    %c1_i32 = arith.constant 1 : i32
    %81 = arith.cmpi eq, %arg0, %c1_i32 : i32
    %82 = arith.extui %81 : i1 to i32
    %c0_i32_77 = arith.constant 0 : i32
    %83 = arith.cmpi ne, %82, %c0_i32_77 : i32
    scf.if %83 {
      %c0_78 = arith.constant 0 : index
      %c0_79 = arith.constant 0 : index
      %84 = vector.load %arg10[%c0_78, %c0_79] : memref<1x128xf32, #tpu.memory_space<vmem>>, vector<1x128xf32>
      %cst_80 = arith.constant 7.812500e-03 : f32
      %85 = vector.broadcast %cst_80 : f32 to vector<1x128xf32>
      %86 = arith.mulf %84, %85 : vector<1x128xf32>
      %c0_81 = arith.constant 0 : index
      %c0_82 = arith.constant 0 : index
      %87 = vector.load %arg11[%c0_81, %c0_82] : memref<1x128xf32, #tpu.memory_space<vmem>>, vector<1x128xf32>
      %cst_83 = arith.constant 7.812500e-03 : f32
      %88 = vector.broadcast %cst_83 : f32 to vector<1x128xf32>
      %89 = arith.mulf %87, %88 : vector<1x128xf32>
      %90 = arith.mulf %86, %86 : vector<1x128xf32>
      %91 = arith.subf %89, %90 : vector<1x128xf32>
      %c0_84 = arith.constant 0 : index
      %c0_85 = arith.constant 0 : index
      %92 = vector.load %arg6[%c0_84, %c0_85] : memref<1x128xf32, #tpu.memory_space<vmem>>, vector<1x128xf32>
      %cst_86 = arith.constant 9.99999974E-6 : f32
      %93 = vector.broadcast %cst_86 : f32 to vector<1x128xf32>
      %94 = arith.addf %91, %93 : vector<1x128xf32>
      %95 = math.rsqrt %94 : vector<1x128xf32>
      %96 = arith.mulf %92, %95 : vector<1x128xf32>
      %c0_87 = arith.constant 0 : index
      %c0_88 = arith.constant 0 : index
      %97 = vector.load %arg7[%c0_87, %c0_88] : memref<1x128xf32, #tpu.memory_space<vmem>>, vector<1x128xf32>
      %98 = arith.mulf %86, %96 : vector<1x128xf32>
      %99 = arith.subf %97, %98 : vector<1x128xf32>
      %c0_89 = arith.constant 0 : index
      %c0_90 = arith.constant 0 : index
      %100 = vector.load %arg9[%c0_89, %c0_90] : memref<8x128xf32, #tpu.memory_space<vmem>>, vector<1x128xf32>
      tpu.vector_store %arg9[%c0_89, %c0_90], %96 {strides = array<i32>} : memref<8x128xf32, #tpu.memory_space<vmem>>, vector<1x128xf32>,
      %c1_91 = arith.constant 1 : index
      %c0_92 = arith.constant 0 : index
      %101 = vector.load %arg9[%c1_91, %c0_92] : memref<8x128xf32, #tpu.memory_space<vmem>>, vector<1x128xf32>
      tpu.vector_store %arg9[%c1_91, %c0_92], %99 {strides = array<i32>} : memref<8x128xf32, #tpu.memory_space<vmem>>, vector<1x128xf32>,
    } else {
    }
    return
  }
  func.func @transform_0(%arg0: i32) -> (i32, i32, i32, i32) {
    %c0_i32 = arith.constant 0 : i32
    %c0_i32_0 = arith.constant 0 : i32
    %c0_i32_1 = arith.constant 0 : i32
    %c0_i32_2 = arith.constant 0 : i32
    return %arg0, %c0_i32, %c0_i32_0, %c0_i32_1 : i32, i32, i32, i32
  }
  func.func @transform_1(%arg0: i32) -> (i32, i32, i32, i32) {
    %c0_i32 = arith.constant 0 : i32
    %c0_i32_0 = arith.constant 0 : i32
    %c0_i32_1 = arith.constant 0 : i32
    %c0_i32_2 = arith.constant 0 : i32
    return %arg0, %c0_i32, %c0_i32_0, %c0_i32_1 : i32, i32, i32, i32
  }
  func.func @transform_2(%arg0: i32) -> (i32, i32, i32, i32) {
    %c0_i32 = arith.constant 0 : i32
    %c0_i32_0 = arith.constant 0 : i32
    %c0_i32_1 = arith.constant 0 : i32
    %c0_i32_2 = arith.constant 0 : i32
    return %arg0, %c0_i32, %c0_i32_0, %c0_i32_1 : i32, i32, i32, i32
  }
  func.func @transform_3(%arg0: i32) -> (i32, i32, i32, i32) {
    %c0_i32 = arith.constant 0 : i32
    %c0_i32_0 = arith.constant 0 : i32
    %c0_i32_1 = arith.constant 0 : i32
    %c0_i32_2 = arith.constant 0 : i32
    return %arg0, %c0_i32, %c0_i32_0, %c0_i32_1 : i32, i32, i32, i32
  }
  func.func @transform_4(%arg0: i32) -> (i32, i32, i32) {
    %c0_i32 = arith.constant 0 : i32
    %c0_i32_0 = arith.constant 0 : i32
    %c0_i32_1 = arith.constant 0 : i32
    %c0_i32_2 = arith.constant 0 : i32
    return %c0_i32, %c0_i32_0, %c0_i32_1 : i32, i32, i32
  }
  func.func @transform_5(%arg0: i32) -> (i32, i32) {
    %c0_i32 = arith.constant 0 : i32
    %c0_i32_0 = arith.constant 0 : i32
    %c0_i32_1 = arith.constant 0 : i32
    return %c0_i32, %c0_i32_0 : i32, i32
  }
  func.func @transform_6(%arg0: i32) -> (i32, i32) {
    %c0_i32 = arith.constant 0 : i32
    %c0_i32_0 = arith.constant 0 : i32
    %c0_i32_1 = arith.constant 0 : i32
    return %c0_i32, %c0_i32_0 : i32, i32
  }
  func.func @transform_7(%arg0: i32) -> (i32, i32, i32) {
    %c0_i32 = arith.constant 0 : i32
    %c0_i32_0 = arith.constant 0 : i32
    %c0_i32_1 = arith.constant 0 : i32
    return %arg0, %c0_i32, %c0_i32_0 : i32, i32, i32
  }
  func.func @transform_8(%arg0: i32) -> (i32, i32) {
    %c0_i32 = arith.constant 0 : i32
    %c0_i32_0 = arith.constant 0 : i32
    %c0_i32_1 = arith.constant 0 : i32
    return %c0_i32, %c0_i32_0 : i32, i32
  }
}

</mosaic_0001>

<llo_original>
// kernel: tpu_custom_call.1
$region0: #{tpu_custom_call.1}
  #allocation0 [shape = 'u32[]', space=smem, size = 0x4, offset = 0x4, fixed_abs, tag = 'smem constant byte address 0x4 - core index']
  #allocation1 [shape = 'u32[72,128]{1,0:T(1,128)}', space=vmem, size = 0x9000, scoped, tag = 'internal scratch']
  #allocation2 [shape = 'f32[1,128]{1,0:T(1,128)}', space=vmem, size = 0x200, scoped, tag = 'scratch operand']
  #allocation3 [shape = 'f32[1,128]{1,0:T(1,128)}', space=vmem, size = 0x200, scoped, tag = 'scratch operand']
  %s0 = inlined_call_operand.vmem [shape: f32[2,9,9,8], index: 0, kind: input, shape index: {}]
  %s1 = inlined_call_operand.vmem [shape: f32[2,9,9,8], index: 1, kind: input, shape index: {}]
  %s2 = inlined_call_operand.vmem [shape: f32[2,9,9,8], index: 2, kind: input, shape index: {}]
  %s3 = inlined_call_operand.vmem [shape: f32[2,9,9,8], index: 3, kind: input, shape index: {}]
  %s4 = inlined_call_operand.vmem [shape: f32[9,8,128], index: 4, kind: input, shape index: {}]
  %s5 = inlined_call_operand.vmem [shape: f32[1,128], index: 5, kind: input, shape index: {}]
  %s6 = inlined_call_operand.vmem [shape: f32[1,128], index: 6, kind: input, shape index: {}]
  %s7 = inlined_call_operand.hbm [shape: f32[2,64,128], index: 7, kind: output, shape index: {0}]
  %s8 = inlined_call_operand.hbm [shape: f32[8,128], index: 8, kind: output, shape index: {1}]
  %9 = xla_tuple %s7, %s8
  %s10 = sld [smem:[#allocation0]]
  $region77: #{tpu_custom_call.1} parent=0
    _
  %s12 = ssub.s32 1, %s10
  %s13 = scalar_select 0, %s12, %s10
  $region1: #{tpu_custom_call.1} parent=0
    #allocation4 [shape = 'u8[65536]{0}', space=vmem, size = 0x10000, scoped, tag = 'output window, operand 0']
    #allocation5 [shape = 's32[2]{0}', space=sflag, size = 0x8, scoped, tag = 'scoped memory for tpu_custom_call.1']
    #allocation6 [shape = 'u8[4096]{0}', space=vmem, size = 0x1000, scoped, tag = 'output window, operand 1, single buffered']
    #allocation7 [shape = 's32[1]{0}', space=sflag, size = 0x4, scoped, tag = 'scoped memory for tpu_custom_call.1']
    %14 = vsyncpa [#allocation5], 0
    %s15 = scalar_lea.sflag [#allocation5], 1
    %16 = vsyncpa %s15, 0
    %17 = vsyncpa [#allocation7], 0
    loop: start=0, step=1, limit=4
    $region2: #{tpu_custom_call.1} parent=1 // loop_pre_header
      _
    $region3: #{tpu_custom_call.1} parent=1 // loop_header
      %s19 = sphi 0, %s23
      %p20 = scmp.ge.s32.totalorder %s19, 4
      %s29 = sphi 0, %s31
      %s32 = sphi 0, %s29
      %s33 = sphi 0, %s32
      %s49 = sphi 0, %s33
      %s55 = sphi 0, %s57
      %s58 = sphi 0, %s55
      %s59 = sphi 0, %s58
      %s75 = sphi 0, %s59
      %s81 = sphi 0, %s83
      %s84 = sphi 0, %s81
      %s85 = sphi 0, %s84
      %s101 = sphi 0, %s85
      %s107 = sphi 0, %s109
      %s110 = sphi 0, %s107
      %s111 = sphi 0, %s110
      %s127 = sphi 0, %s111
      %s131 = sphi 0, %s131
      %s133 = sphi 0, %s131
      %s134 = sphi 0, %s133
      %s148 = sphi 0, %s134
      %s152 = sphi 0, %s152
      %s154 = sphi 0, %s152
      %s155 = sphi 0, %s154
      %s169 = sphi 0, %s155
      %s173 = sphi 0, %s173
      %s175 = sphi 0, %s173
      %s176 = sphi 0, %s175
      %s190 = sphi 0, %s176
      %s196 = sphi 0, %s198
      %s199 = sphi 0, %s196
      %s200 = sphi 0, %s199
      %s216 = sphi 0, %s200
      %s220 = sphi 0, %s220
      %s222 = sphi 0, %s220
      %s223 = sphi 0, %s222
      %s237 = sphi 0, %s223
    $region4: #{tpu_custom_call.1} parent=1 // loop_header_branch
      %22 = sbr.rel (%p20) target = $region8
    $region5: #{tpu_custom_call.1} parent=1 // loop_body
      %s24 = ssub.s32 %s19, 1
      %s25 = ssub.s32 %s19, 2
      %s26 = sadd.s32 %s19, 1
      %s27 = ssub.s32 %s19, %s26
      %p28 = scmp.eq.s32.totalorder %s27, 0
      %s30 = sadd.s32 %s29, 1
      %s31 = scalar_select %p28, %s29, %s30
      %p34 = pneg %p28
      %p35 = scmp.eq.s32.totalorder %s19, 1
      %p36 = por %p34, %p35
      %p37 = scmp.ne.s32.totalorder %s29, %s32
      %p38 = scmp.eq.s32.totalorder %s19, 0
      %p39 = por %p37, %p38
      %p40 = scmp.ne.s32.totalorder %s29, %s32
      %p41 = scmp.eq.s32.totalorder %s24, 1
      %p42 = por %p40, %p41
      %p43 = scmp.ne.s32.totalorder %s32, %s33
      %p44 = scmp.eq.s32.totalorder %s24, 0
      %p45 = por %p43, %p44
      %p46 = scmp.ne.s32.totalorder %s32, %s33
      %p47 = scmp.eq.s32.totalorder %s25, 1
      %p48 = por %p46, %p47
      %p50 = scmp.ne.s32.totalorder %s33, %s49
      %p51 = scmp.eq.s32.totalorder %s25, 0
      %p52 = por %p50, %p51
      %s53 = ssub.s32 %s19, %s26
      %p54 = scmp.eq.s32.totalorder %s53, 0
      %s56 = sadd.s32 %s55, 1
      %s57 = scalar_select %p54, %s55, %s56
      %p60 = pneg %p54
      %p61 = scmp.eq.s32.totalorder %s19, 1
      %p62 = por %p60, %p61
      %p63 = scmp.ne.s32.totalorder %s55, %s58
      %p64 = scmp.eq.s32.totalorder %s19, 0
      %p65 = por %p63, %p64
      %p66 = scmp.ne.s32.totalorder %s55, %s58
      %p67 = scmp.eq.s32.totalorder %s24, 1
      %p68 = por %p66, %p67
      %p69 = scmp.ne.s32.totalorder %s58, %s59
      %p70 = scmp.eq.s32.totalorder %s24, 0
      %p71 = por %p69, %p70
      %p72 = scmp.ne.s32.totalorder %s58, %s59
      %p73 = scmp.eq.s32.totalorder %s25, 1
      %p74 = por %p72, %p73
      %p76 = scmp.ne.s32.totalorder %s59, %s75
      %p77 = scmp.eq.s32.totalorder %s25, 0
      %p78 = por %p76, %p77
      %s79 = ssub.s32 %s19, %s26
      %p80 = scmp.eq.s32.totalorder %s79, 0
      %s82 = sadd.s32 %s81, 1
      %s83 = scalar_select %p80, %s81, %s82
      %p86 = pneg %p80
      %p87 = scmp.eq.s32.totalorder %s19, 1
      %p88 = por %p86, %p87
      %p89 = scmp.ne.s32.totalorder %s81, %s84
      %p90 = scmp.eq.s32.totalorder %s19, 0
      %p91 = por %p89, %p90
      %p92 = scmp.ne.s32.totalorder %s81, %s84
      %p93 = scmp.eq.s32.totalorder %s24, 1
      %p94 = por %p92, %p93
      %p95 = scmp.ne.s32.totalorder %s84, %s85
      %p96 = scmp.eq.s32.totalorder %s24, 0
      %p97 = por %p95, %p96
      %p98 = scmp.ne.s32.totalorder %s84, %s85
      %p99 = scmp.eq.s32.totalorder %s25, 1
      %p100 = por %p98, %p99
      %p102 = scmp.ne.s32.totalorder %s85, %s101
      %p103 = scmp.eq.s32.totalorder %s25, 0
      %p104 = por %p102, %p103
      %s105 = ssub.s32 %s19, %s26
      %p106 = scmp.eq.s32.totalorder %s105, 0
      %s108 = sadd.s32 %s107, 1
      %s109 = scalar_select %p106, %s107, %s108
      %p112 = pneg %p106
      %p113 = scmp.eq.s32.totalorder %s19, 1
      %p114 = por %p112, %p113
      %p115 = scmp.ne.s32.totalorder %s107, %s110
      %p116 = scmp.eq.s32.totalorder %s19, 0
      %p117 = por %p115, %p116
      %p118 = scmp.ne.s32.totalorder %s107, %s110
      %p119 = scmp.eq.s32.totalorder %s24, 1
      %p120 = por %p118, %p119
      %p121 = scmp.ne.s32.totalorder %s110, %s111
      %p122 = scmp.eq.s32.totalorder %s24, 0
      %p123 = por %p121, %p122
      %p124 = scmp.ne.s32.totalorder %s110, %s111
      %p125 = scmp.eq.s32.totalorder %s25, 1
      %p126 = por %p124, %p125
      %p128 = scmp.ne.s32.totalorder %s111, %s127
      %p129 = scmp.eq.s32.totalorder %s25, 0
      %p130 = por %p128, %p129
      %s132 = sadd.s32 %s131, 1
      %p135 = scmp.eq.s32.totalorder %s19, 1
      %p136 = scmp.ne.s32.totalorder %s131, %s133
      %p137 = scmp.eq.s32.totalorder %s19, 0
      %p138 = por %p136, %p137
      %p139 = scmp.ne.s32.totalorder %s131, %s133
      %p140 = scmp.eq.s32.totalorder %s24, 1
      %p141 = por %p139, %p140
      %p142 = scmp.ne.s32.totalorder %s133, %s134
      %p143 = scmp.eq.s32.totalorder %s24, 0
      %p144 = por %p142, %p143
      %p145 = scmp.ne.s32.totalorder %s133, %s134
      %p146 = scmp.eq.s32.totalorder %s25, 1
      %p147 = por %p145, %p146
      %p149 = scmp.ne.s32.totalorder %s134, %s148
      %p150 = scmp.eq.s32.totalorder %s25, 0
      %p151 = por %p149, %p150
      %s153 = sadd.s32 %s152, 1
      %p156 = scmp.eq.s32.totalorder %s19, 1
      %p157 = scmp.ne.s32.totalorder %s152, %s154
      %p158 = scmp.eq.s32.totalorder %s19, 0
      %p159 = por %p157, %p158
      %p160 = scmp.ne.s32.totalorder %s152, %s154
      %p161 = scmp.eq.s32.totalorder %s24, 1
      %p162 = por %p160, %p161
      %p163 = scmp.ne.s32.totalorder %s154, %s155
      %p164 = scmp.eq.s32.totalorder %s24, 0
      %p165 = por %p163, %p164
      %p166 = scmp.ne.s32.totalorder %s154, %s155
      %p167 = scmp.eq.s32.totalorder %s25, 1
      %p168 = por %p166, %p167
      %p170 = scmp.ne.s32.totalorder %s155, %s169
      %p171 = scmp.eq.s32.totalorder %s25, 0
      %p172 = por %p170, %p171
      %s174 = sadd.s32 %s173, 1
      %p177 = scmp.eq.s32.totalorder %s19, 1
      %p178 = scmp.ne.s32.totalorder %s173, %s175
      %p179 = scmp.eq.s32.totalorder %s19, 0
      %p180 = por %p178, %p179
      %p181 = scmp.ne.s32.totalorder %s173, %s175
      %p182 = scmp.eq.s32.totalorder %s24, 1
      %p183 = por %p181, %p182
      %p184 = scmp.ne.s32.totalorder %s175, %s176
      %p185 = scmp.eq.s32.totalorder %s24, 0
      %p186 = por %p184, %p185
      %p187 = scmp.ne.s32.totalorder %s175, %s176
      %p188 = scmp.eq.s32.totalorder %s25, 1
      %p189 = por %p187, %p188
      %p191 = scmp.ne.s32.totalorder %s176, %s190
      %p192 = scmp.eq.s32.totalorder %s25, 0
      %p193 = por %p191, %p192
      %s194 = ssub.s32 %s19, %s26
      %p195 = scmp.eq.s32.totalorder %s194, 0
      %s197 = sadd.s32 %s196, 1
      %s198 = scalar_select %p195, %s196, %s197
      %p201 = pneg %p195
      %p202 = scmp.eq.s32.totalorder %s19, 1
      %p203 = por %p201, %p202
      %p204 = scmp.ne.s32.totalorder %s196, %s199
      %p205 = scmp.eq.s32.totalorder %s19, 0
      %p206 = por %p204, %p205
      %p207 = scmp.ne.s32.totalorder %s196, %s199
      %p208 = scmp.eq.s32.totalorder %s24, 1
      %p209 = por %p207, %p208
      %p210 = scmp.ne.s32.totalorder %s199, %s200
      %p211 = scmp.eq.s32.totalorder %s24, 0
      %p212 = por %p210, %p211
      %p213 = scmp.ne.s32.totalorder %s199, %s200
      %p214 = scmp.eq.s32.totalorder %s25, 1
      %p215 = por %p213, %p214
      %p217 = scmp.ne.s32.totalorder %s200, %s216
      %p218 = scmp.eq.s32.totalorder %s25, 0
      %p219 = por %p217, %p218
      %s221 = sadd.s32 %s220, 1
      %p224 = scmp.eq.s32.totalorder %s19, 1
      %p225 = scmp.ne.s32.totalorder %s220, %s222
      %p226 = scmp.eq.s32.totalorder %s19, 0
      %p227 = por %p225, %p226
      %p228 = scmp.ne.s32.totalorder %s220, %s222
      %p229 = scmp.eq.s32.totalorder %s24, 1
      %p230 = por %p228, %p229
      %p231 = scmp.ne.s32.totalorder %s222, %s223
      %p232 = scmp.eq.s32.totalorder %s24, 0
      %p233 = por %p231, %p232
      %p234 = scmp.ne.s32.totalorder %s222, %s223
      %p235 = scmp.eq.s32.totalorder %s25, 1
      %p236 = por %p234, %p235
      %p238 = scmp.ne.s32.totalorder %s223, %s237
      %p239 = scmp.eq.s32.totalorder %s25, 0
      %p240 = por %p238, %p239
      %p241 = scmp.le.s32.totalorder 1, %s19
      %p242 = scmp.lt.s32.totalorder %s19, 3
      %p243 = pnand %p241, %p242
      %p244 = pneg %p243
      // Predicated region
      $region9: #{tpu_custom_call.1} parent=5 // pred_check
        _
      $region10: #{tpu_custom_call.1} parent=5 // pred_check_branch
        %246 = sbr.rel (%p243) target = $region12
      $region11: #{tpu_custom_call.1} parent=5 // pred_region
        %s247 = ssub.s32 %s19, 1
        // Predicated region
        $region13: #{tpu_custom_call.1} parent=11 // pred_check
          %p248 = pneg %p144
        $region14: #{tpu_custom_call.1} parent=11 // pred_check_branch
          %250 = sbr.rel (%p248) target = $region16
        $region15: #{tpu_custom_call.1} parent=11 // pred_region
          _
        $region16: #{tpu_custom_call.1} parent=11 // pred_fallthru
          _
        // Predicated region
        $region17: #{tpu_custom_call.1} parent=11 // pred_check
          %p251 = pneg %p165
        $region18: #{tpu_custom_call.1} parent=11 // pred_check_branch
          %253 = sbr.rel (%p251) target = $region20
        $region19: #{tpu_custom_call.1} parent=11 // pred_region
          _
        $region20: #{tpu_custom_call.1} parent=11 // pred_fallthru
          _
        // Predicated region
        $region21: #{tpu_custom_call.1} parent=11 // pred_check
          %p254 = pneg %p186
        $region22: #{tpu_custom_call.1} parent=11 // pred_check_branch
          %256 = sbr.rel (%p254) target = $region24
        $region23: #{tpu_custom_call.1} parent=11 // pred_region
          _
        $region24: #{tpu_custom_call.1} parent=11 // pred_fallthru
          _
      $region12: #{tpu_custom_call.1} parent=5 // pred_fallthru
        _
      %p257 = scmp.lt.s32.totalorder %s19, 2
      // Predicated region
      $region25: #{tpu_custom_call.1} parent=5 // pred_check
        %p258 = pneg %p257
      $region26: #{tpu_custom_call.1} parent=5 // pred_check_branch
        %260 = sbr.rel (%p258) target = $region28
      $region27: #{tpu_custom_call.1} parent=5 // pred_region
        // Predicated region
        $region29: #{tpu_custom_call.1} parent=27 // pred_check
          %p261 = pneg %p39
        $region30: #{tpu_custom_call.1} parent=27 // pred_check_branch
          %263 = sbr.rel (%p261) target = $region32
        $region31: #{tpu_custom_call.1} parent=27 // pred_region
          %p264 = scmp.lt.s32.totalorder %s19, 1
          %s265 = scalar_select %p264, %s19, 1
          %s266 = smul.addr %s265, 18
          %s267 = smul.addr %s266, 8
          %s268 = scalar_lea.vmem %s0, %s267
        $region32: #{tpu_custom_call.1} parent=27 // pred_fallthru
          _
        // Predicated region
        $region33: #{tpu_custom_call.1} parent=27 // pred_check
          %p269 = pneg %p65
        $region34: #{tpu_custom_call.1} parent=27 // pred_check_branch
          %271 = sbr.rel (%p269) target = $region36
        $region35: #{tpu_custom_call.1} parent=27 // pred_region
          %p272 = scmp.lt.s32.totalorder %s19, 1
          %s273 = scalar_select %p272, %s19, 1
          %s274 = smul.addr %s273, 18
          %s275 = smul.addr %s274, 8
          %s276 = scalar_lea.vmem %s1, %s275
        $region36: #{tpu_custom_call.1} parent=27 // pred_fallthru
          _
        // Predicated region
        $region37: #{tpu_custom_call.1} parent=27 // pred_check
          %p277 = pneg %p91
        $region38: #{tpu_custom_call.1} parent=27 // pred_check_branch
          %279 = sbr.rel (%p277) target = $region40
        $region39: #{tpu_custom_call.1} parent=27 // pred_region
          %p280 = scmp.lt.s32.totalorder %s19, 1
          %s281 = scalar_select %p280, %s19, 1
          %s282 = smul.addr %s281, 18
          %s283 = smul.addr %s282, 8
          %s284 = scalar_lea.vmem %s2, %s283
        $region40: #{tpu_custom_call.1} parent=27 // pred_fallthru
          _
        // Predicated region
        $region41: #{tpu_custom_call.1} parent=27 // pred_check
          %p285 = pneg %p117
        $region42: #{tpu_custom_call.1} parent=27 // pred_check_branch
          %287 = sbr.rel (%p285) target = $region44
        $region43: #{tpu_custom_call.1} parent=27 // pred_region
          %p288 = scmp.lt.s32.totalorder %s19, 1
          %s289 = scalar_select %p288, %s19, 1
          %s290 = smul.addr %s289, 18
          %s291 = smul.addr %s290, 8
          %s292 = scalar_lea.vmem %s3, %s291
        $region44: #{tpu_custom_call.1} parent=27 // pred_fallthru
          _
      $region28: #{tpu_custom_call.1} parent=5 // pred_fallthru
        _
      %p293 = scmp.le.s32.totalorder 1, %s19
      %p294 = scmp.lt.s32.totalorder %s19, 3
      %p295 = pnand %p293, %p294
      %p296 = pneg %p295
      // Predicated region
      $region45: #{tpu_custom_call.1} parent=5 // pred_check
        _
      $region46: #{tpu_custom_call.1} parent=5 // pred_check_branch
        %298 = sbr.rel (%p295) target = $region48
      $region47: #{tpu_custom_call.1} parent=5 // pred_region
        %s299 = ssub.s32 %s19, 1
        %p300 = scmp.lt.s32.totalorder %s24, 1
        %s301 = scalar_select %p300, %s24, 1
        %s302 = smul.addr %s301, 18
        %s303 = smul.addr %s302, 8
        %s304 = scalar_lea.vmem %s0, %s303
        %p305 = pneg %p45
        %p306 = pneg %p42
        %p307 = scmp.lt.s32.totalorder %s24, 1
        %s308 = scalar_select %p307, %s24, 1
        %s309 = smul.addr %s308, 18
        %s310 = smul.addr %s309, 8
        %s311 = scalar_lea.vmem %s1, %s310
        %p312 = pneg %p71
        %p313 = pneg %p68
        %p314 = scmp.lt.s32.totalorder %s24, 1
        %s315 = scalar_select %p314, %s24, 1
        %s316 = smul.addr %s315, 18
        %s317 = smul.addr %s316, 8
        %s318 = scalar_lea.vmem %s2, %s317
        %p319 = pneg %p97
        %p320 = pneg %p94
        %p321 = scmp.lt.s32.totalorder %s24, 1
        %s322 = scalar_select %p321, %s24, 1
        %s323 = smul.addr %s322, 18
        %s324 = smul.addr %s323, 8
        %s325 = scalar_lea.vmem %s3, %s324
        %p326 = pneg %p123
        %p327 = pneg %p120
        %p328 = pneg %p144
        %p329 = pneg %p141
        %p330 = pneg %p165
        %p331 = pneg %p162
        %p332 = pneg %p186
        %p333 = pneg %p183
        %p334 = pneg %p212
        %p335 = pneg %p209
        %s336 = sand.u32 %s199, 1
        %s337 = scalar_lea.sflag [#allocation5], %s336
        %s338 = sand.u32 %s199, 1
        %s339 = smul.addr %s338, 64
        %s340 = scalar_lea.vmem [#allocation4], %s339
        %p341 = pneg %p233
        %p342 = pneg %p230
        %p343 = scmp.lt.s32.totalorder %s24, 1
        %s344 = scalar_select %p343, %s24, 1
        %s345 = smul.addr %s344, 18
        %s346 = smul.addr %s345, 8
        %s347 = scalar_lea.vmem %s0, %s346
        %p348 = scmp.lt.s32.totalorder %s24, 1
        %s349 = scalar_select %p348, %s24, 1
        %s350 = smul.addr %s349, 18
        %s351 = smul.addr %s350, 8
        %s352 = scalar_lea.vmem %s1, %s351
        %p353 = scmp.lt.s32.totalorder %s24, 1
        %s354 = scalar_select %p353, %s24, 1
        %s355 = smul.addr %s354, 18
        %s356 = smul.addr %s355, 8
        %s357 = scalar_lea.vmem %s2, %s356
        %p358 = scmp.lt.s32.totalorder %s24, 1
        %s359 = scalar_select %p358, %s24, 1
        %s360 = smul.addr %s359, 18
        %s361 = smul.addr %s360, 8
        %s362 = scalar_lea.vmem %s3, %s361
        %p363 = scmp.eq.s32.totalorder %s24, 0
        // Predicated region
        $region49: #{tpu_custom_call.1} parent=47 // pred_check
          %p364 = pneg %p363
        $region50: #{tpu_custom_call.1} parent=47 // pred_check_branch
          %366 = sbr.rel (%p364) target = $region52
        $region51: #{tpu_custom_call.1} parent=47 // pred_region
          %367 = vst [vmem:[#allocation2] sm:$0x1] 0.0
          %368 = vst [vmem:[#allocation3] sm:$0x1] 0.0
          %369 = vst [vmem:[#allocation6] sm:$0xff] 0.0
        $region52: #{tpu_custom_call.1} parent=47 // pred_fallthru
          _
        %v370 = vld [vmem:[%s347] sm:$0xff]
        %v371 = vld [vmem:[%s347 + $0x10] sm:$0xff]
        %v372 = vld [vmem:[%s347 + $0x20] sm:$0xff]
        %v373 = vld [vmem:[%s347 + $0x30] sm:$0xff]
        %v374 = vld [vmem:[%s347 + $0x40] sm:$0xff]
        %v375 = vld [vmem:[%s347 + $0x50] sm:$0xff]
        %v376 = vld [vmem:[%s347 + $0x60] sm:$0xff]
        %v377 = vld [vmem:[%s347 + $0x70] sm:$0xff]
        %v378 = vld [vmem:[%s4] sm:$0xff]
        %v379 = vld [vmem:[%s352] sm:$0xff]
        %v380 = vld [vmem:[%s352 + $0x10] sm:$0xff]
        %v381 = vld [vmem:[%s352 + $0x20] sm:$0xff]
        %v382 = vld [vmem:[%s352 + $0x30] sm:$0xff]
        %v383 = vld [vmem:[%s352 + $0x40] sm:$0xff]
        %v384 = vld [vmem:[%s352 + $0x50] sm:$0xff]
        %v385 = vld [vmem:[%s352 + $0x60] sm:$0xff]
        %v386 = vld [vmem:[%s352 + $0x70] sm:$0xff]
        %s387 = scalar_lea.vmem %s4, 8
        %v388 = vld [vmem:[%s387] sm:$0xff]
        %vm389 = vcmask 64512
        %v391 = vsel %vm389, %v379, 0
        %v394 = vsel %vm389, %v380, 0
        %v397 = vsel %vm389, %v381, 0
        %v400 = vsel %vm389, %v382, 0
        %v403 = vsel %vm389, %v383, 0
        %v406 = vsel %vm389, %v384, 0
        %v409 = vsel %vm389, %v385, 0
        %v412 = vsel %vm389, %v386, 0
        %414 = vmatpush.msra.mxu0 0.0
        %415 = vmatpush.msra.mxu0 0.0
        %416 = vmatpush.msra.mxu0 0.0
        %417 = vmatpush.msra.mxu0 0.0
        %418 = vmatpush.msra.mxu0 0.0
        %419 = vmatpush.msra.mxu0 0.0
        %420 = vmatpush.msra.mxu0 0.0
        %421 = vmatpush.msra.mxu0 0.0
        %422 = vmatpush.msra.mxu0 0.0
        %423 = vmatpush.msra.mxu0 0.0
        %424 = vmatpush.msra.mxu0 0.0
        %425 = vmatpush.msra.mxu0 0.0
        %426 = vmatpush.msra.mxu0 0.0
        %427 = vmatpush.msra.mxu0 0.0
        %428 = vmatpush.msra.mxu0 0.0
        %429 = vmatpush.msra.mxu0 %v388
        %430 = vmatmul.f32.gmra.mxu0 %v391
        %v431 = vpop.f32.mrf.mxu0
        %v432 = vadd.f32 0.0, %v431
        %433 = vmatmul.f32.gmra.mxu0 %v394
        %v434 = vpop.f32.mrf.mxu0
        %v435 = vadd.f32 0.0, %v434
        %436 = vmatmul.f32.gmra.mxu0 %v397
        %v437 = vpop.f32.mrf.mxu0
        %v438 = vadd.f32 0.0, %v437
        %439 = vmatmul.f32.gmra.mxu0 %v400
        %v440 = vpop.f32.mrf.mxu0
        %v441 = vadd.f32 0.0, %v440
        %442 = vmatmul.f32.gmra.mxu0 %v403
        %v443 = vpop.f32.mrf.mxu0
        %v444 = vadd.f32 0.0, %v443
        %445 = vmatmul.f32.gmra.mxu0 %v406
        %v446 = vpop.f32.mrf.mxu0
        %v447 = vadd.f32 0.0, %v446
        %448 = vmatmul.f32.gmra.mxu0 %v409
        %v449 = vpop.f32.mrf.mxu0
        %v450 = vadd.f32 0.0, %v449
        %451 = vmatmul.f32.gmra.mxu0 %v412
        %v452 = vpop.f32.mrf.mxu0
        %v453 = vadd.f32 0.0, %v452
        %454 = vdwg.mxu0
        %v456 = vsel %vm389, %v370, 0
        %v459 = vsel %vm389, %v371, 0
        %v462 = vsel %vm389, %v372, 0
        %v465 = vsel %vm389, %v373, 0
        %v468 = vsel %vm389, %v374, 0
        %v471 = vsel %vm389, %v375, 0
        %v474 = vsel %vm389, %v376, 0
        %v477 = vsel %vm389, %v377, 0
        %479 = vmatpush.msra.mxu0 0.0
        %480 = vmatpush.msra.mxu0 0.0
        %481 = vmatpush.msra.mxu0 0.0
        %482 = vmatpush.msra.mxu0 0.0
        %483 = vmatpush.msra.mxu0 0.0
        %484 = vmatpush.msra.mxu0 0.0
        %485 = vmatpush.msra.mxu0 0.0
        %486 = vmatpush.msra.mxu0 0.0
        %487 = vmatpush.msra.mxu0 0.0
        %488 = vmatpush.msra.mxu0 0.0
        %489 = vmatpush.msra.mxu0 0.0
        %490 = vmatpush.msra.mxu0 0.0
        %491 = vmatpush.msra.mxu0 0.0
        %492 = vmatpush.msra.mxu0 0.0
        %493 = vmatpush.msra.mxu0 0.0
        %494 = vmatpush.msra.mxu0 %v378
        %495 = vmatmul.f32.gmra.mxu0 %v456
        %v496 = vpop.f32.mrf.mxu0
        %v497 = vadd.f32 %v432, %v496
        %498 = vmatmul.f32.gmra.mxu0 %v459
        %v499 = vpop.f32.mrf.mxu0
        %v500 = vadd.f32 %v435, %v499
        %501 = vmatmul.f32.gmra.mxu0 %v462
        %v502 = vpop.f32.mrf.mxu0
        %v503 = vadd.f32 %v438, %v502
        %504 = vmatmul.f32.gmra.mxu0 %v465
        %v505 = vpop.f32.mrf.mxu0
        %v506 = vadd.f32 %v441, %v505
        %507 = vmatmul.f32.gmra.mxu0 %v468
        %v508 = vpop.f32.mrf.mxu0
        %v509 = vadd.f32 %v444, %v508
        %510 = vmatmul.f32.gmra.mxu0 %v471
        %v511 = vpop.f32.mrf.mxu0
        %v512 = vadd.f32 %v447, %v511
        %513 = vmatmul.f32.gmra.mxu0 %v474
        %v514 = vpop.f32.mrf.mxu0
        %v515 = vadd.f32 %v450, %v514
        %516 = vmatmul.f32.gmra.mxu0 %v477
        %v517 = vpop.f32.mrf.mxu0
        %v518 = vadd.f32 %v453, %v517
        %519 = vdwg.mxu0
        %v520 = vld [vmem:[%s347 + $0x1] sm:$0xff]
        %v521 = vld [vmem:[%s347 + $0x11] sm:$0xff]
        %v522 = vld [vmem:[%s347 + $0x21] sm:$0xff]
        %v523 = vld [vmem:[%s347 + $0x31] sm:$0xff]
        %v524 = vld [vmem:[%s347 + $0x41] sm:$0xff]
        %v525 = vld [vmem:[%s347 + $0x51] sm:$0xff]
        %v526 = vld [vmem:[%s347 + $0x61] sm:$0xff]
        %v527 = vld [vmem:[%s347 + $0x71] sm:$0xff]
        %s528 = scalar_lea.vmem %s4, 16
        %v529 = vld [vmem:[%s528] sm:$0xff]
        %v531 = vsel %vm389, %v520, 0
        %v534 = vsel %vm389, %v521, 0
        %v537 = vsel %vm389, %v522, 0
        %v540 = vsel %vm389, %v523, 0
        %v543 = vsel %vm389, %v524, 0
        %v546 = vsel %vm389, %v525, 0
        %v549 = vsel %vm389, %v526, 0
        %v552 = vsel %vm389, %v527, 0
        %554 = vmatpush.msra.mxu0 0.0
        %555 = vmatpush.msra.mxu0 0.0
        %556 = vmatpush.msra.mxu0 0.0
        %557 = vmatpush.msra.mxu0 0.0
        %558 = vmatpush.msra.mxu0 0.0
        %559 = vmatpush.msra.mxu0 0.0
        %560 = vmatpush.msra.mxu0 0.0
        %561 = vmatpush.msra.mxu0 0.0
        %562 = vmatpush.msra.mxu0 0.0
        %563 = vmatpush.msra.mxu0 0.0
        %564 = vmatpush.msra.mxu0 0.0
        %565 = vmatpush.msra.mxu0 0.0
        %566 = vmatpush.msra.mxu0 0.0
        %567 = vmatpush.msra.mxu0 0.0
        %568 = vmatpush.msra.mxu0 0.0
        %569 = vmatpush.msra.mxu0 %v529
        %570 = vmatmul.f32.gmra.mxu0 %v531
        %v571 = vpop.f32.mrf.mxu0
        %v572 = vadd.f32 0.0, %v571
        %573 = vmatmul.f32.gmra.mxu0 %v534
        %v574 = vpop.f32.mrf.mxu0
        %v575 = vadd.f32 0.0, %v574
        %576 = vmatmul.f32.gmra.mxu0 %v537
        %v577 = vpop.f32.mrf.mxu0
        %v578 = vadd.f32 0.0, %v577
        %579 = vmatmul.f32.gmra.mxu0 %v540
        %v580 = vpop.f32.mrf.mxu0
        %v581 = vadd.f32 0.0, %v580
        %582 = vmatmul.f32.gmra.mxu0 %v543
        %v583 = vpop.f32.mrf.mxu0
        %v584 = vadd.f32 0.0, %v583
        %585 = vmatmul.f32.gmra.mxu0 %v546
        %v586 = vpop.f32.mrf.mxu0
        %v587 = vadd.f32 0.0, %v586
        %588 = vmatmul.f32.gmra.mxu0 %v549
        %v589 = vpop.f32.mrf.mxu0
        %v590 = vadd.f32 0.0, %v589
        %591 = vmatmul.f32.gmra.mxu0 %v552
        %v592 = vpop.f32.mrf.mxu0
        %v593 = vadd.f32 0.0, %v592
        %594 = vdwg.mxu0
        %v595 = vadd.f32 %v497, %v572
        %v596 = vadd.f32 %v500, %v575
        %v597 = vadd.f32 %v503, %v578
        %v598 = vadd.f32 %v506, %v581
        %v599 = vadd.f32 %v509, %v584
        %v600 = vadd.f32 %v512, %v587
        %v601 = vadd.f32 %v515, %v590
        %v602 = vadd.f32 %v518, %v593
        %v603 = vld [vmem:[%s357] sm:$0xff]
        %v604 = vld [vmem:[%s357 + $0x10] sm:$0xff]
        %v605 = vld [vmem:[%s357 + $0x20] sm:$0xff]
        %v606 = vld [vmem:[%s357 + $0x30] sm:$0xff]
        %v607 = vld [vmem:[%s357 + $0x40] sm:$0xff]
        %v608 = vld [vmem:[%s357 + $0x50] sm:$0xff]
        %v609 = vld [vmem:[%s357 + $0x60] sm:$0xff]
        %v610 = vld [vmem:[%s357 + $0x70] sm:$0xff]
        %s611 = scalar_lea.vmem %s4, 24
        %v612 = vld [vmem:[%s611] sm:$0xff]
        %v614 = vsel %vm389, %v603, 0
        %v617 = vsel %vm389, %v604, 0
        %v620 = vsel %vm389, %v605, 0
        %v623 = vsel %vm389, %v606, 0
        %v626 = vsel %vm389, %v607, 0
        %v629 = vsel %vm389, %v608, 0
        %v632 = vsel %vm389, %v609, 0
        %v635 = vsel %vm389, %v610, 0
        %637 = vmatpush.msra.mxu0 0.0
        %638 = vmatpush.msra.mxu0 0.0
        %639 = vmatpush.msra.mxu0 0.0
        %640 = vmatpush.msra.mxu0 0.0
        %641 = vmatpush.msra.mxu0 0.0
        %642 = vmatpush.msra.mxu0 0.0
        %643 = vmatpush.msra.mxu0 0.0
        %644 = vmatpush.msra.mxu0 0.0
        %645 = vmatpush.msra.mxu0 0.0
        %646 = vmatpush.msra.mxu0 0.0
        %647 = vmatpush.msra.mxu0 0.0
        %648 = vmatpush.msra.mxu0 0.0
        %649 = vmatpush.msra.mxu0 0.0
        %650 = vmatpush.msra.mxu0 0.0
        %651 = vmatpush.msra.mxu0 0.0
        %652 = vmatpush.msra.mxu0 %v612
        %653 = vmatmul.f32.gmra.mxu0 %v614
        %v654 = vpop.f32.mrf.mxu0
        %v655 = vadd.f32 0.0, %v654
        %656 = vmatmul.f32.gmra.mxu0 %v617
        %v657 = vpop.f32.mrf.mxu0
        %v658 = vadd.f32 0.0, %v657
        %659 = vmatmul.f32.gmra.mxu0 %v620
        %v660 = vpop.f32.mrf.mxu0
        %v661 = vadd.f32 0.0, %v660
        %662 = vmatmul.f32.gmra.mxu0 %v623
        %v663 = vpop.f32.mrf.mxu0
        %v664 = vadd.f32 0.0, %v663
        %665 = vmatmul.f32.gmra.mxu0 %v626
        %v666 = vpop.f32.mrf.mxu0
        %v667 = vadd.f32 0.0, %v666
        %668 = vmatmul.f32.gmra.mxu0 %v629
        %v669 = vpop.f32.mrf.mxu0
        %v670 = vadd.f32 0.0, %v669
        %671 = vmatmul.f32.gmra.mxu0 %v632
        %v672 = vpop.f32.mrf.mxu0
        %v673 = vadd.f32 0.0, %v672
        %674 = vmatmul.f32.gmra.mxu0 %v635
        %v675 = vpop.f32.mrf.mxu0
        %v676 = vadd.f32 0.0, %v675
        %677 = vdwg.mxu0
        %v678 = vadd.f32 %v595, %v655
        %v679 = vadd.f32 %v596, %v658
        %v680 = vadd.f32 %v597, %v661
        %v681 = vadd.f32 %v598, %v664
        %v682 = vadd.f32 %v599, %v667
        %v683 = vadd.f32 %v600, %v670
        %v684 = vadd.f32 %v601, %v673
        %v685 = vadd.f32 %v602, %v676
        %v686 = vld [vmem:[%s362] sm:$0xff]
        %v687 = vld [vmem:[%s362 + $0x10] sm:$0xff]
        %v688 = vld [vmem:[%s362 + $0x20] sm:$0xff]
        %v689 = vld [vmem:[%s362 + $0x30] sm:$0xff]
        %v690 = vld [vmem:[%s362 + $0x40] sm:$0xff]
        %v691 = vld [vmem:[%s362 + $0x50] sm:$0xff]
        %v692 = vld [vmem:[%s362 + $0x60] sm:$0xff]
        %v693 = vld [vmem:[%s362 + $0x70] sm:$0xff]
        %s694 = scalar_lea.vmem %s4, 32
        %v695 = vld [vmem:[%s694] sm:$0xff]
        %v697 = vsel %vm389, %v686, 0
        %v700 = vsel %vm389, %v687, 0
        %v703 = vsel %vm389, %v688, 0
        %v706 = vsel %vm389, %v689, 0
        %v709 = vsel %vm389, %v690, 0
        %v712 = vsel %vm389, %v691, 0
        %v715 = vsel %vm389, %v692, 0
        %v718 = vsel %vm389, %v693, 0
        %720 = vmatpush.msra.mxu0 0.0
        %721 = vmatpush.msra.mxu0 0.0
        %722 = vmatpush.msra.mxu0 0.0
        %723 = vmatpush.msra.mxu0 0.0
        %724 = vmatpush.msra.mxu0 0.0
        %725 = vmatpush.msra.mxu0 0.0
        %726 = vmatpush.msra.mxu0 0.0
        %727 = vmatpush.msra.mxu0 0.0
        %728 = vmatpush.msra.mxu0 0.0
        %729 = vmatpush.msra.mxu0 0.0
        %730 = vmatpush.msra.mxu0 0.0
        %731 = vmatpush.msra.mxu0 0.0
        %732 = vmatpush.msra.mxu0 0.0
        %733 = vmatpush.msra.mxu0 0.0
        %734 = vmatpush.msra.mxu0 0.0
        %735 = vmatpush.msra.mxu0 %v695
        %736 = vmatmul.f32.gmra.mxu0 %v697
        %v737 = vpop.f32.mrf.mxu0
        %v738 = vadd.f32 0.0, %v737
        %739 = vmatmul.f32.gmra.mxu0 %v700
        %v740 = vpop.f32.mrf.mxu0
        %v741 = vadd.f32 0.0, %v740
        %742 = vmatmul.f32.gmra.mxu0 %v703
        %v743 = vpop.f32.mrf.mxu0
        %v744 = vadd.f32 0.0, %v743
        %745 = vmatmul.f32.gmra.mxu0 %v706
        %v746 = vpop.f32.mrf.mxu0
        %v747 = vadd.f32 0.0, %v746
        %748 = vmatmul.f32.gmra.mxu0 %v709
        %v749 = vpop.f32.mrf.mxu0
        %v750 = vadd.f32 0.0, %v749
        %751 = vmatmul.f32.gmra.mxu0 %v712
        %v752 = vpop.f32.mrf.mxu0
        %v753 = vadd.f32 0.0, %v752
        %754 = vmatmul.f32.gmra.mxu0 %v715
        %v755 = vpop.f32.mrf.mxu0
        %v756 = vadd.f32 0.0, %v755
        %757 = vmatmul.f32.gmra.mxu0 %v718
        %v758 = vpop.f32.mrf.mxu0
        %v759 = vadd.f32 0.0, %v758
        %760 = vdwg.mxu0
        %v761 = vadd.f32 %v678, %v738
        %v762 = vadd.f32 %v679, %v741
        %v763 = vadd.f32 %v680, %v744
        %v764 = vadd.f32 %v681, %v747
        %v765 = vadd.f32 %v682, %v750
        %v766 = vadd.f32 %v683, %v753
        %v767 = vadd.f32 %v684, %v756
        %v768 = vadd.f32 %v685, %v759
        %v769 = vld [vmem:[%s357 + $0x1] sm:$0xff]
        %v770 = vld [vmem:[%s357 + $0x11] sm:$0xff]
        %v771 = vld [vmem:[%s357 + $0x21] sm:$0xff]
        %v772 = vld [vmem:[%s357 + $0x31] sm:$0xff]
        %v773 = vld [vmem:[%s357 + $0x41] sm:$0xff]
        %v774 = vld [vmem:[%s357 + $0x51] sm:$0xff]
        %v775 = vld [vmem:[%s357 + $0x61] sm:$0xff]
        %v776 = vld [vmem:[%s357 + $0x71] sm:$0xff]
        %s777 = scalar_lea.vmem %s4, 40
        %v778 = vld [vmem:[%s777] sm:$0xff]
        %v780 = vsel %vm389, %v769, 0
        %v783 = vsel %vm389, %v770, 0
        %v786 = vsel %vm389, %v771, 0
        %v789 = vsel %vm389, %v772, 0
        %v792 = vsel %vm389, %v773, 0
        %v795 = vsel %vm389, %v774, 0
        %v798 = vsel %vm389, %v775, 0
        %v801 = vsel %vm389, %v776, 0
        %803 = vmatpush.msra.mxu0 0.0
        %804 = vmatpush.msra.mxu0 0.0
        %805 = vmatpush.msra.mxu0 0.0
        %806 = vmatpush.msra.mxu0 0.0
        %807 = vmatpush.msra.mxu0 0.0
        %808 = vmatpush.msra.mxu0 0.0
        %809 = vmatpush.msra.mxu0 0.0
        %810 = vmatpush.msra.mxu0 0.0
        %811 = vmatpush.msra.mxu0 0.0
        %812 = vmatpush.msra.mxu0 0.0
        %813 = vmatpush.msra.mxu0 0.0
        %814 = vmatpush.msra.mxu0 0.0
        %815 = vmatpush.msra.mxu0 0.0
        %816 = vmatpush.msra.mxu0 0.0
        %817 = vmatpush.msra.mxu0 0.0
        %818 = vmatpush.msra.mxu0 %v778
        %819 = vmatmul.f32.gmra.mxu0 %v780
        %v820 = vpop.f32.mrf.mxu0
        %v821 = vadd.f32 0.0, %v820
        %822 = vmatmul.f32.gmra.mxu0 %v783
        %v823 = vpop.f32.mrf.mxu0
        %v824 = vadd.f32 0.0, %v823
        %825 = vmatmul.f32.gmra.mxu0 %v786
        %v826 = vpop.f32.mrf.mxu0
        %v827 = vadd.f32 0.0, %v826
        %828 = vmatmul.f32.gmra.mxu0 %v789
        %v829 = vpop.f32.mrf.mxu0
        %v830 = vadd.f32 0.0, %v829
        %831 = vmatmul.f32.gmra.mxu0 %v792
        %v832 = vpop.f32.mrf.mxu0
        %v833 = vadd.f32 0.0, %v832
        %834 = vmatmul.f32.gmra.mxu0 %v795
        %v835 = vpop.f32.mrf.mxu0
        %v836 = vadd.f32 0.0, %v835
        %837 = vmatmul.f32.gmra.mxu0 %v798
        %v838 = vpop.f32.mrf.mxu0
        %v839 = vadd.f32 0.0, %v838
        %840 = vmatmul.f32.gmra.mxu0 %v801
        %v841 = vpop.f32.mrf.mxu0
        %v842 = vadd.f32 0.0, %v841
        %843 = vdwg.mxu0
        %v844 = vadd.f32 %v761, %v821
        %v845 = vadd.f32 %v762, %v824
        %v846 = vadd.f32 %v763, %v827
        %v847 = vadd.f32 %v764, %v830
        %v848 = vadd.f32 %v765, %v833
        %v849 = vadd.f32 %v766, %v836
        %v850 = vadd.f32 %v767, %v839
        %v851 = vadd.f32 %v768, %v842
        %s852 = scalar_lea.vmem %s347, 16
        %v853 = vld [vmem:[%s852] sm:$0xff]
        %v854 = vld [vmem:[%s852 + $0x10] sm:$0xff]
        %v855 = vld [vmem:[%s852 + $0x20] sm:$0xff]
        %v856 = vld [vmem:[%s852 + $0x30] sm:$0xff]
        %v857 = vld [vmem:[%s852 + $0x40] sm:$0xff]
        %v858 = vld [vmem:[%s852 + $0x50] sm:$0xff]
        %v859 = vld [vmem:[%s852 + $0x60] sm:$0xff]
        %v860 = vld [vmem:[%s852 + $0x70] sm:$0xff]
        %s861 = scalar_lea.vmem %s4, 48
        %v862 = vld [vmem:[%s861] sm:$0xff]
        %v864 = vsel %vm389, %v853, 0
        %v867 = vsel %vm389, %v854, 0
        %v870 = vsel %vm389, %v855, 0
        %v873 = vsel %vm389, %v856, 0
        %v876 = vsel %vm389, %v857, 0
        %v879 = vsel %vm389, %v858, 0
        %v882 = vsel %vm389, %v859, 0
        %v885 = vsel %vm389, %v860, 0
        %887 = vmatpush.msra.mxu0 0.0
        %888 = vmatpush.msra.mxu0 0.0
        %889 = vmatpush.msra.mxu0 0.0
        %890 = vmatpush.msra.mxu0 0.0
        %891 = vmatpush.msra.mxu0 0.0
        %892 = vmatpush.msra.mxu0 0.0
        %893 = vmatpush.msra.mxu0 0.0
        %894 = vmatpush.msra.mxu0 0.0
        %895 = vmatpush.msra.mxu0 0.0
        %896 = vmatpush.msra.mxu0 0.0
        %897 = vmatpush.msra.mxu0 0.0
        %898 = vmatpush.msra.mxu0 0.0
        %899 = vmatpush.msra.mxu0 0.0
        %900 = vmatpush.msra.mxu0 0.0
        %901 = vmatpush.msra.mxu0 0.0
        %902 = vmatpush.msra.mxu0 %v862
        %903 = vmatmul.f32.gmra.mxu0 %v864
        %v904 = vpop.f32.mrf.mxu0
        %v905 = vadd.f32 0.0, %v904
        %906 = vmatmul.f32.gmra.mxu0 %v867
        %v907 = vpop.f32.mrf.mxu0
        %v908 = vadd.f32 0.0, %v907
        %909 = vmatmul.f32.gmra.mxu0 %v870
        %v910 = vpop.f32.mrf.mxu0
        %v911 = vadd.f32 0.0, %v910
        %912 = vmatmul.f32.gmra.mxu0 %v873
        %v913 = vpop.f32.mrf.mxu0
        %v914 = vadd.f32 0.0, %v913
        %915 = vmatmul.f32.gmra.mxu0 %v876
        %v916 = vpop.f32.mrf.mxu0
        %v917 = vadd.f32 0.0, %v916
        %918 = vmatmul.f32.gmra.mxu0 %v879
        %v919 = vpop.f32.mrf.mxu0
        %v920 = vadd.f32 0.0, %v919
        %921 = vmatmul.f32.gmra.mxu0 %v882
        %v922 = vpop.f32.mrf.mxu0
        %v923 = vadd.f32 0.0, %v922
        %924 = vmatmul.f32.gmra.mxu0 %v885
        %v925 = vpop.f32.mrf.mxu0
        %v926 = vadd.f32 0.0, %v925
        %927 = vdwg.mxu0
        %v928 = vadd.f32 %v844, %v905
        %v929 = vadd.f32 %v845, %v908
        %v930 = vadd.f32 %v846, %v911
        %v931 = vadd.f32 %v847, %v914
        %v932 = vadd.f32 %v848, %v917
        %v933 = vadd.f32 %v849, %v920
        %v934 = vadd.f32 %v850, %v923
        %v935 = vadd.f32 %v851, %v926
        %s936 = scalar_lea.vmem %s352, 16
        %v937 = vld [vmem:[%s936] sm:$0xff]
        %v938 = vld [vmem:[%s936 + $0x10] sm:$0xff]
        %v939 = vld [vmem:[%s936 + $0x20] sm:$0xff]
        %v940 = vld [vmem:[%s936 + $0x30] sm:$0xff]
        %v941 = vld [vmem:[%s936 + $0x40] sm:$0xff]
        %v942 = vld [vmem:[%s936 + $0x50] sm:$0xff]
        %v943 = vld [vmem:[%s936 + $0x60] sm:$0xff]
        %v944 = vld [vmem:[%s936 + $0x70] sm:$0xff]
        %s945 = scalar_lea.vmem %s4, 56
        %v946 = vld [vmem:[%s945] sm:$0xff]
        %v948 = vsel %vm389, %v937, 0
        %v951 = vsel %vm389, %v938, 0
        %v954 = vsel %vm389, %v939, 0
        %v957 = vsel %vm389, %v940, 0
        %v960 = vsel %vm389, %v941, 0
        %v963 = vsel %vm389, %v942, 0
        %v966 = vsel %vm389, %v943, 0
        %v969 = vsel %vm389, %v944, 0
        %971 = vmatpush.msra.mxu0 0.0
        %972 = vmatpush.msra.mxu0 0.0
        %973 = vmatpush.msra.mxu0 0.0
        %974 = vmatpush.msra.mxu0 0.0
        %975 = vmatpush.msra.mxu0 0.0
        %976 = vmatpush.msra.mxu0 0.0
        %977 = vmatpush.msra.mxu0 0.0
        %978 = vmatpush.msra.mxu0 0.0
        %979 = vmatpush.msra.mxu0 0.0
        %980 = vmatpush.msra.mxu0 0.0
        %981 = vmatpush.msra.mxu0 0.0
        %982 = vmatpush.msra.mxu0 0.0
        %983 = vmatpush.msra.mxu0 0.0
        %984 = vmatpush.msra.mxu0 0.0
        %985 = vmatpush.msra.mxu0 0.0
        %986 = vmatpush.msra.mxu0 %v946
        %987 = vmatmul.f32.gmra.mxu0 %v948
        %v988 = vpop.f32.mrf.mxu0
        %v989 = vadd.f32 0.0, %v988
        %990 = vmatmul.f32.gmra.mxu0 %v951
        %v991 = vpop.f32.mrf.mxu0
        %v992 = vadd.f32 0.0, %v991
        %993 = vmatmul.f32.gmra.mxu0 %v954
        %v994 = vpop.f32.mrf.mxu0
        %v995 = vadd.f32 0.0, %v994
        %996 = vmatmul.f32.gmra.mxu0 %v957
        %v997 = vpop.f32.mrf.mxu0
        %v998 = vadd.f32 0.0, %v997
        %999 = vmatmul.f32.gmra.mxu0 %v960
        %v1000 = vpop.f32.mrf.mxu0
        %v1001 = vadd.f32 0.0, %v1000
        %1002 = vmatmul.f32.gmra.mxu0 %v963
        %v1003 = vpop.f32.mrf.mxu0
        %v1004 = vadd.f32 0.0, %v1003
        %1005 = vmatmul.f32.gmra.mxu0 %v966
        %v1006 = vpop.f32.mrf.mxu0
        %v1007 = vadd.f32 0.0, %v1006
        %1008 = vmatmul.f32.gmra.mxu0 %v969
        %v1009 = vpop.f32.mrf.mxu0
        %v1010 = vadd.f32 0.0, %v1009
        %1011 = vdwg.mxu0
        %v1012 = vadd.f32 %v928, %v989
        %v1013 = vadd.f32 %v929, %v992
        %v1014 = vadd.f32 %v930, %v995
        %v1015 = vadd.f32 %v931, %v998
        %v1016 = vadd.f32 %v932, %v1001
        %v1017 = vadd.f32 %v933, %v1004
        %v1018 = vadd.f32 %v934, %v1007
        %v1019 = vadd.f32 %v935, %v1010
        %v1020 = vld [vmem:[%s852 + $0x1] sm:$0xff]
        %v1021 = vld [vmem:[%s852 + $0x11] sm:$0xff]
        %v1022 = vld [vmem:[%s852 + $0x21] sm:$0xff]
        %v1023 = vld [vmem:[%s852 + $0x31] sm:$0xff]
        %v1024 = vld [vmem:[%s852 + $0x41] sm:$0xff]
        %v1025 = vld [vmem:[%s852 + $0x51] sm:$0xff]
        %v1026 = vld [vmem:[%s852 + $0x61] sm:$0xff]
        %v1027 = vld [vmem:[%s852 + $0x71] sm:$0xff]
        %s1028 = scalar_lea.vmem %s4, 64
        %v1029 = vld [vmem:[%s1028] sm:$0xff]
        %v1031 = vsel %vm389, %v1020, 0
        %v1034 = vsel %vm389, %v1021, 0
        %v1037 = vsel %vm389, %v1022, 0
        %v1040 = vsel %vm389, %v1023, 0
        %v1043 = vsel %vm389, %v1024, 0
        %v1046 = vsel %vm389, %v1025, 0
        %v1049 = vsel %vm389, %v1026, 0
        %v1052 = vsel %vm389, %v1027, 0
        %1054 = vmatpush.msra.mxu0 0.0
        %1055 = vmatpush.msra.mxu0 0.0
        %1056 = vmatpush.msra.mxu0 0.0
        %1057 = vmatpush.msra.mxu0 0.0
        %1058 = vmatpush.msra.mxu0 0.0
        %1059 = vmatpush.msra.mxu0 0.0
        %1060 = vmatpush.msra.mxu0 0.0
        %1061 = vmatpush.msra.mxu0 0.0
        %1062 = vmatpush.msra.mxu0 0.0
        %1063 = vmatpush.msra.mxu0 0.0
        %1064 = vmatpush.msra.mxu0 0.0
        %1065 = vmatpush.msra.mxu0 0.0
        %1066 = vmatpush.msra.mxu0 0.0
        %1067 = vmatpush.msra.mxu0 0.0
        %1068 = vmatpush.msra.mxu0 0.0
        %1069 = vmatpush.msra.mxu0 %v1029
        %1070 = vmatmul.f32.gmra.mxu0 %v1031
        %v1071 = vpop.f32.mrf.mxu0
        %v1072 = vadd.f32 0.0, %v1071
        %1073 = vmatmul.f32.gmra.mxu0 %v1034
        %v1074 = vpop.f32.mrf.mxu0
        %v1075 = vadd.f32 0.0, %v1074
        %1076 = vmatmul.f32.gmra.mxu0 %v1037
        %v1077 = vpop.f32.mrf.mxu0
        %v1078 = vadd.f32 0.0, %v1077
        %1079 = vmatmul.f32.gmra.mxu0 %v1040
        %v1080 = vpop.f32.mrf.mxu0
        %v1081 = vadd.f32 0.0, %v1080
        %1082 = vmatmul.f32.gmra.mxu0 %v1043
        %v1083 = vpop.f32.mrf.mxu0
        %v1084 = vadd.f32 0.0, %v1083
        %1085 = vmatmul.f32.gmra.mxu0 %v1046
        %v1086 = vpop.f32.mrf.mxu0
        %v1087 = vadd.f32 0.0, %v1086
        %1088 = vmatmul.f32.gmra.mxu0 %v1049
        %v1089 = vpop.f32.mrf.mxu0
        %v1090 = vadd.f32 0.0, %v1089
        %1091 = vmatmul.f32.gmra.mxu0 %v1052
        %v1092 = vpop.f32.mrf.mxu0
        %v1093 = vadd.f32 0.0, %v1092
        %1094 = vdwg.mxu0
        %v1095 = vadd.f32 %v1012, %v1072
        %v1096 = vadd.f32 %v1013, %v1075
        %v1097 = vadd.f32 %v1014, %v1078
        %v1098 = vadd.f32 %v1015, %v1081
        %v1099 = vadd.f32 %v1016, %v1084
        %v1100 = vadd.f32 %v1017, %v1087
        %v1101 = vadd.f32 %v1018, %v1090
        %v1102 = vadd.f32 %v1019, %v1093
        %1103 = vst [vmem:[%s340] sm:$0xff] %v1095
        %1104 = vst [vmem:[%s340 + $0x8] sm:$0xff] %v1096
        %1105 = vst [vmem:[%s340 + $0x10] sm:$0xff] %v1097
        %1106 = vst [vmem:[%s340 + $0x18] sm:$0xff] %v1098
        %1107 = vst [vmem:[%s340 + $0x20] sm:$0xff] %v1099
        %1108 = vst [vmem:[%s340 + $0x28] sm:$0xff] %v1100
        %1109 = vst [vmem:[%s340 + $0x30] sm:$0xff] %v1101
        %1110 = vst [vmem:[%s340 + $0x38] sm:$0xff] %v1102
        %v1111 = vld [vmem:[#allocation2] sm:$0x1]
        %v1112 = vadd.f32 %v1095, %v1096
        %v1113 = vadd.f32 %v1112, %v1097
        %v1114 = vadd.f32 %v1113, %v1098
        %v1115 = vadd.f32 %v1114, %v1099
        %v1116 = vadd.f32 %v1115, %v1100
        %v1117 = vadd.f32 %v1116, %v1101
        %v1118 = vadd.f32 %v1117, %v1102
        %v1119 = vrot.slane %v1118, 4
        %v1120 = vadd.f32 %v1118, %v1119
        %v1121 = vrot.slane %v1120, 2
        %v1122 = vadd.f32 %v1120, %v1121
        %v1123 = vrot.slane %v1122, 1
        %v1124 = vadd.f32 %v1122, %v1123
        %v1125 = vadd.f32 %v1111, %v1124
        %1126 = vst [vmem:[#allocation2] sm:$0x1] %v1125
        %v1127 = vld [vmem:[#allocation3] sm:$0x1]
        %v1128 = vmul.f32 %v1095, %v1095
        %v1129 = vmul.f32 %v1096, %v1096
        %v1130 = vmul.f32 %v1097, %v1097
        %v1131 = vmul.f32 %v1098, %v1098
        %v1132 = vmul.f32 %v1099, %v1099
        %v1133 = vmul.f32 %v1100, %v1100
        %v1134 = vmul.f32 %v1101, %v1101
        %v1135 = vmul.f32 %v1102, %v1102
        %v1136 = vadd.f32 %v1128, %v1129
        %v1137 = vadd.f32 %v1136, %v1130
        %v1138 = vadd.f32 %v1137, %v1131
        %v1139 = vadd.f32 %v1138, %v1132
        %v1140 = vadd.f32 %v1139, %v1133
        %v1141 = vadd.f32 %v1140, %v1134
        %v1142 = vadd.f32 %v1141, %v1135
        %v1143 = vrot.slane %v1142, 4
        %v1144 = vadd.f32 %v1142, %v1143
        %v1145 = vrot.slane %v1144, 2
        %v1146 = vadd.f32 %v1144, %v1145
        %v1147 = vrot.slane %v1146, 1
        %v1148 = vadd.f32 %v1146, %v1147
        %v1149 = vadd.f32 %v1127, %v1148
        %1150 = vst [vmem:[#allocation3] sm:$0x1] %v1149
        %p1151 = scmp.eq.s32.totalorder %s24, 1
        // Predicated region
        $region53: #{tpu_custom_call.1} parent=47 // pred_check
          %p1152 = pneg %p1151
        $region54: #{tpu_custom_call.1} parent=47 // pred_check_branch
          %1154 = sbr.rel (%p1152) target = $region56
        $region55: #{tpu_custom_call.1} parent=47 // pred_region
          %v1155 = vld [vmem:[#allocation2] sm:$0x1]
          %v1156 = vmul.f32 %v1155, 0.0078125
          %v1157 = vld [vmem:[#allocation3] sm:$0x1]
          %v1158 = vmul.f32 %v1157, 0.0078125
          %v1159 = vmul.f32 %v1156, %v1156
          %v1160 = vsub.f32 %v1158, %v1159
          %v1161 = vld [vmem:[%s5] sm:$0x1]
          %v1162 = vadd.f32 %v1160, 1e-05
          %v1163 = vrsqrt.pop %v1162
          %v1164 = vmul.f32 %v1163, %v1162
          %v1165 = vmul.f32 %v1164, %v1163
          %v1166 = vmul.f32 0.5, %v1165
          %v1167 = vsub.f32 1.5, %v1166
          %v1168 = vmul.f32 %v1163, %v1167
          %vm1169 = vweird.f32 %v1162
          %vm1170 = vweird.f32 %v1163
          %vm1171 = vmor %vm1169, %vm1170
          %v1172 = vsel %vm1171, %v1163, %v1168
          %v1173 = vmul.f32 %v1161, %v1172
          %v1174 = vld [vmem:[%s6] sm:$0x1]
          %v1175 = vmul.f32 %v1156, %v1173
          %v1176 = vsub.f32 %v1174, %v1175
          %1177 = vst [vmem:[#allocation6] sm:$0x1] %v1173
          %1178 = vst [vmem:[#allocation6 + $0x1] sm:$0x1] %v1176
        $region56: #{tpu_custom_call.1} parent=47 // pred_fallthru
          _
        %s1179 = sand.u32 %s199, 1
        %s1180 = scalar_lea.sflag [#allocation5], %s1179
        %s1181 = sand.u32 %s199, 1
        %s1182 = smul.addr %s1181, 64
        %s1183 = scalar_lea.vmem [#allocation4], %s1182
        // Predicated region
        $region57: #{tpu_custom_call.1} parent=47 // pred_check
          %p1184 = pneg %p209
        $region58: #{tpu_custom_call.1} parent=47 // pred_check_branch
          %1186 = sbr.rel (%p1184) target = $region60
        $region59: #{tpu_custom_call.1} parent=47 // pred_region
          %1188 = vsyncadd %s1180, 0
          %s1189 = smul.addr %s24, 8
          %s1190 = smul.addr %s1189, 8
          %s1191 = scalar_lea.hbm %s7, %s1190
          %s1192 = sshll.u32 %s1183, 4
          %s1193 = int_to_ptr.vmem [resolvable:$true] %s1192
          %s1194 = sshll.u32 %s1191, 4
          %s1195 = int_to_ptr.hbm [resolvable:$true] %s1194
          %1200 = dma.vmem_to_hbm [thread:$0]  %s1193, 1024, %s1195, %s1180, 128, 128, 8
        $region60: #{tpu_custom_call.1} parent=47 // pred_fallthru
          _
        // Predicated region
        $region61: #{tpu_custom_call.1} parent=47 // pred_check
          %p1201 = pneg %p230
        $region62: #{tpu_custom_call.1} parent=47 // pred_check_branch
          %1203 = sbr.rel (%p1201) target = $region64
        $region63: #{tpu_custom_call.1} parent=47 // pred_region
          %1205 = vsyncadd [#allocation7], 0
          %s1207 = sshll.u32 [#allocation6], 4
          %s1208 = int_to_ptr.vmem [resolvable:$true] %s1207
          %s1209 = sshll.u32 %s8, 4
          %s1210 = int_to_ptr.hbm [resolvable:$true] %s1209
          %1212 = dma.vmem_to_hbm [thread:$0]  %s1208, 128, %s1210, [#allocation7]
        $region64: #{tpu_custom_call.1} parent=47 // pred_fallthru
          _
        // Predicated region
        $region65: #{tpu_custom_call.1} parent=47 // pred_check
          %p1213 = pneg %p230
        $region66: #{tpu_custom_call.1} parent=47 // pred_check_branch
          %1215 = sbr.rel (%p1213) target = $region68
        $region67: #{tpu_custom_call.1} parent=47 // pred_region
          %1217 = dma.done [#allocation7], 128
        $region68: #{tpu_custom_call.1} parent=47 // pred_fallthru
          _
      $region48: #{tpu_custom_call.1} parent=5 // pred_fallthru
        _
      %p1218 = scmp.le.s32.totalorder 2, %s19
      // Predicated region
      $region69: #{tpu_custom_call.1} parent=5 // pred_check
        %p1219 = pneg %p1218
      $region70: #{tpu_custom_call.1} parent=5 // pred_check_branch
        %1221 = sbr.rel (%p1219) target = $region72
      $region71: #{tpu_custom_call.1} parent=5 // pred_region
        %s1222 = ssub.s32 %s19, 2
        // Predicated region
        $region73: #{tpu_custom_call.1} parent=71 // pred_check
          %p1223 = pneg %p215
        $region74: #{tpu_custom_call.1} parent=71 // pred_check_branch
          %1225 = sbr.rel (%p1223) target = $region76
        $region75: #{tpu_custom_call.1} parent=71 // pred_region
          %s1226 = sand.u32 %s200, 1
          %s1227 = scalar_lea.sflag [#allocation5], %s1226
          %s1228 = sand.u32 %s200, 1
          %s1229 = smul.addr %s1228, 64
          %s1230 = scalar_lea.vmem [#allocation4], %s1229
          %1232 = dma.done %s1227, 1024
        $region76: #{tpu_custom_call.1} parent=71 // pred_fallthru
          _
      $region72: #{tpu_custom_call.1} parent=5 // pred_fallthru
        _
    $region6: #{tpu_custom_call.1} parent=1 // loop_footer
      %s23 = sadd.s32 1, %s19
    $region7: #{tpu_custom_call.1} parent=1 // loop_footer_branch
      %18 = sbr.rel target = $region3
    $region8: #{tpu_custom_call.1} parent=1 // loop_exit
      _
    %1233 = vsyncpa [#allocation5], 1
    %s1234 = scalar_lea.sflag [#allocation5], 1
    %1235 = vsyncpa %s1234, 1
    %1236 = vsyncpa [#allocation7], 1

</llo_original>
